<compile_context>
chip_gen: v5e
topology: v5e:2x2
jax: 0.10.0
libtpu: 0.0.40
codegen_flags: <defaults>
</compile_context>

<pallas_src>
import functools
import math

import jax
import jax.numpy as jnp
from jax.experimental import pallas as pl
from jax.experimental.pallas import tpu as pltpu


def _softmax_lastdim(x):
    # x: f32.  exp on VPU/EUP, denominator reciprocal on the EUP slot.
    m = jnp.max(x, axis=-1, keepdims=True)
    e = jnp.exp(x - m)
    return e * pl.reciprocal(jnp.sum(e, axis=-1, keepdims=True), approx=True)


def attention_fuser_kernel(txt_ref, au_ref, vi_ref,
                           wt_ref, wa_ref, wv_ref, wav_ref,
                           out_ref, *, scale, D, L, block_b):
    """One grid step == `block_b` batch elements.

    txt_ref/au_ref/vi_ref : (block_b, L, D) f32 VMEM tiles
    wt_ref                : (D, 8D) bf16   (resident across the grid)
    wa_ref, wv_ref        : (D, 6D) bf16
    wav_ref               : (D, D)  bf16
    out_ref               : (block_b, L, 7D) f32 VMEM tile
    """
    f32 = jnp.float32
    bf16 = jnp.bfloat16

    txt = txt_ref[...]   # (Bb, L, D) f32
    au = au_ref[...]
    vi = vi_ref[...]

    def project(x, w_ref):
        # One wide MXU matmul per input stream; weight ref read at the dot site.
        x2d = x.reshape(block_b * L, D).astype(bf16)
        y = jnp.dot(x2d, w_ref[...], preferred_element_type=f32)
        return y.reshape(block_b, L, -1)

    p_t = project(txt, wt_ref)   # (Bb, L, 8D)
    p_a = project(au, wa_ref)    # (Bb, L, 6D)
    p_v = project(vi, wv_ref)    # (Bb, L, 6D)

    def sl(p, i):
        return p[..., i * D:(i + 1) * D]

    def cross_attend(q, k, v, residual):
        # softmax(q k^T / sqrt(D)) v + residual ; MXU operands bf16, math f32.
        s = jnp.einsum('bld,bmd->blm', q.astype(bf16), k.astype(bf16),
                       preferred_element_type=f32) * scale
        p = _softmax_lastdim(s)
        o = jnp.einsum('blm,bmd->bld', p.astype(bf16), v.astype(bf16),
                       preferred_element_type=f32)
        return o + residual

    # ta, at = SymmetricAttention(txt, au)
    ta = cross_attend(sl(p_t, 1), sl(p_a, 0), sl(p_a, 2), txt)
    at = cross_attend(sl(p_a, 1), sl(p_t, 0), sl(p_t, 2), au)
    # va, av = SymmetricAttention(vi, au)
    va = cross_attend(sl(p_v, 1), sl(p_a, 3), sl(p_a, 5), vi)
    av = cross_attend(sl(p_a, 4), sl(p_v, 0), sl(p_v, 2), au)
    # tv, vt = SymmetricAttention(txt, vi)
    tv = cross_attend(sl(p_t, 4), sl(p_v, 3), sl(p_v, 5), txt)
    vt = cross_attend(sl(p_v, 4), sl(p_t, 3), sl(p_t, 5), vi)

    av = va + av
    tv = vt + tv
    ta = ta + at

    # tav, _ = Attention(txt, queries=av): keys/values come from txt, no residual.
    k = sl(p_t, 6)
    v = sl(p_t, 7)
    q = jnp.dot(av.reshape(block_b * L, D).astype(bf16), wav_ref[...],
                preferred_element_type=f32).reshape(block_b, L, D)
    s = _softmax_lastdim(
        jnp.einsum('bld,bmd->blm', q.astype(bf16), k.astype(bf16),
                   preferred_element_type=f32) * scale)
    tav = jnp.einsum('blm,bmd->bld', s.astype(bf16), v.astype(bf16),
                     preferred_element_type=f32)

    # fused = cat([txt, au, vi, ta, tv, av, tav], dim=-1) -> one full-tile store.
    out_ref[...] = jnp.concatenate([txt, au, vi, ta, tv, av, tav], axis=-1)


def attention_fuser(txt, au, vi, weights, *, block_b=None):
    B, L, D = txt.shape
    assert au.shape == (B, L, D) and vi.shape == (B, L, D)
    assert weights.shape == (21, D, D)

    # Keep >= 2 parallel grid steps when possible (v7x has 2 TensorCores),
    # while batching several examples per step for bigger MXU M.
    if block_b is None:
        block_b = B // 2 if (B % 2 == 0 and B >= 2) else B
    assert B % block_b == 0
    grid_b = B // block_b

    scale = 1.0 / math.sqrt(D)  # Attention / SymmetricAttention use sqrt(dk=input_size)

    # Host-side regrouping of the 21 bias-free Linear weights into 4 slabs (bf16
    # MXU operands; activations stay f32 in HBM and are cast inside the kernel).
    W = weights
    w_txt = jnp.concatenate(
        [W[0], W[1], W[2], W[12], W[13], W[14], W[18], W[20]], axis=1).astype(jnp.bfloat16)
    w_au = jnp.concatenate(
        [W[3], W[4], W[5], W[9], W[10], W[11]], axis=1).astype(jnp.bfloat16)
    w_vi = jnp.concatenate(
        [W[6], W[7], W[8], W[15], W[16], W[17]], axis=1).astype(jnp.bfloat16)
    w_av = W[19].astype(jnp.bfloat16)

    kernel = functools.partial(attention_fuser_kernel,
                               scale=scale, D=D, L=L, block_b=block_b)
    mod_spec = pl.BlockSpec((block_b, L, D), lambda b: (b, 0, 0))
    return pl.pallas_call(
        kernel,
        out_shape=jax.ShapeDtypeStruct((B, L, 7 * D), jnp.float32),
        grid_spec=pltpu.PrefetchScalarGridSpec(
            num_scalar_prefetch=0,
            grid=(grid_b,),
            in_specs=[
                mod_spec, mod_spec, mod_spec,
                pl.BlockSpec((D, 8 * D), lambda b: (0, 0)),
                pl.BlockSpec((D, 6 * D), lambda b: (0, 0)),
                pl.BlockSpec((D, 6 * D), lambda b: (0, 0)),
                pl.BlockSpec((D, D), lambda b: (0, 0)),
            ],
            out_specs=pl.BlockSpec((block_b, L, 7 * D), lambda b: (b, 0, 0)),
        ),
        compiler_params=pltpu.CompilerParams(dimension_semantics=("parallel",)),
    )(txt, au, vi, w_txt, w_au, w_vi, w_av)


# ---------------- pure-JAX reference (mirrors the PyTorch forward, f32) ---------
def _ref_softmax(x):
    m = jnp.max(x, axis=-1, keepdims=True)
    e = jnp.exp(x - m)
    return e / jnp.sum(e, axis=-1, keepdims=True)


def attention_fuser_ref(txt, au, vi, weights):
    D = txt.shape[-1]
    scale = 1.0 / math.sqrt(D)
    lin = lambda x, i: x @ weights[i]

    def sym(m1, m2, base):
        k_x, q_x, v_x = lin(m1, base + 0), lin(m1, base + 1), lin(m1, base + 2)
        k_y, q_y, v_y = lin(m2, base + 3), lin(m2, base + 4), lin(m2, base + 5)
        s_xy = _ref_softmax(jnp.einsum("bld,bmd->blm", q_x, k_y) * scale)
        s_yx = _ref_softmax(jnp.einsum("bld,bmd->blm", q_y, k_x) * scale)
        return (jnp.einsum("blm,bmd->bld", s_xy, v_y) + m1,
                jnp.einsum("blm,bmd->bld", s_yx, v_x) + m2)

    ta, at = sym(txt, au, 0)
    va, av = sym(vi, au, 6)
    tv, vt = sym(txt, vi, 12)
    av = va + av
    tv = vt + tv
    ta = ta + at
    k, q, v = lin(txt, 18), lin(av, 19), lin(txt, 20)
    s = _ref_softmax(jnp.einsum("bld,bmd->blm", q, k) * scale)
    tav = jnp.einsum("blm,bmd->bld", s, v)
    return jnp.concatenate([txt, au, vi, ta, tv, av, tav], axis=-1)


if __name__ == "__main__":
    B, L, D = 2, 8, 32  # proj_sz = 32, seq = 8, batch = 2
    key = jax.random.PRNGKey(0)
    k1, k2, k3, kw = jax.random.split(key, 4)
    txt = jax.random.normal(k1, (B, L, D), jnp.float32)
    au = jax.random.normal(k2, (B, L, D), jnp.float32)
    vi = jax.random.normal(k3, (B, L, D), jnp.float32)
    # deterministic synthetic weights for the 21 bias-free Linear layers
    weights = jax.random.normal(kw, (21, D, D), jnp.float32) * 0.05

    out = attention_fuser(txt, au, vi, weights)
    out = jax.block_until_ready(out)
    assert out.shape == (B, L, 7 * D), out.shape

    ref = attention_fuser_ref(txt, au, vi, weights)
    # bf16 MXU operands (f32 accumulation) -> loosened tolerance vs. f32 reference.
    assert jnp.allclose(out, ref, atol=5e-2, rtol=5e-2), \
        float(jnp.max(jnp.abs(out - ref)))

    print("KERNEL_OK")
</pallas_src>

<mosaic_0001>
module attributes {stable_mosaic.version = 11 : i64} {
  func.func @attention_fuser_kernel(%arg0: i32, %arg1: memref<1x8x32xf32, #tpu.memory_space<vmem>>, %arg2: memref<1x8x32xf32, #tpu.memory_space<vmem>>, %arg3: memref<1x8x32xf32, #tpu.memory_space<vmem>>, %arg4: memref<32x256xbf16, #tpu.memory_space<vmem>>, %arg5: memref<32x192xbf16, #tpu.memory_space<vmem>>, %arg6: memref<32x192xbf16, #tpu.memory_space<vmem>>, %arg7: memref<32x32xbf16, #tpu.memory_space<vmem>>, %arg8: memref<1x8x224xf32, #tpu.memory_space<vmem>>) attributes {dimension_semantics = [#tpu.dimension_semantics<parallel>], iteration_bounds = array<i64: 2>, scalar_prefetch = 0 : i64, scratch_operands = 0 : i64, tpu.core_type = #tpu.core_type<tc>, window_params = [{transform_indices = @transform_0, window_bounds = array<i64: 1, 8, 32>}, {transform_indices = @transform_1, window_bounds = array<i64: 1, 8, 32>}, {transform_indices = @transform_2, window_bounds = array<i64: 1, 8, 32>}, {pipeline_mode = #tpu.pipeline_mode<synchronous>, transform_indices = @transform_3, window_bounds = array<i64: 32, 256>}, {pipeline_mode = #tpu.pipeline_mode<synchronous>, transform_indices = @transform_4, window_bounds = array<i64: 32, 192>}, {pipeline_mode = #tpu.pipeline_mode<synchronous>, transform_indices = @transform_5, window_bounds = array<i64: 32, 192>}, {pipeline_mode = #tpu.pipeline_mode<synchronous>, transform_indices = @transform_6, window_bounds = array<i64: 32, 32>}, {transform_indices = @transform_7, window_bounds = array<i64: 1, 8, 224>}]} {
    %c0 = arith.constant 0 : index
    %c0_0 = arith.constant 0 : index
    %c0_1 = arith.constant 0 : index
    %0 = vector.load %arg1[%c0, %c0_0, %c0_1] : memref<1x8x32xf32, #tpu.memory_space<vmem>>, vector<1x8x32xf32>
    %c0_2 = arith.constant 0 : index
    %c0_3 = arith.constant 0 : index
    %c0_4 = arith.constant 0 : index
    %1 = vector.load %arg2[%c0_2, %c0_3, %c0_4] : memref<1x8x32xf32, #tpu.memory_space<vmem>>, vector<1x8x32xf32>
    %c0_5 = arith.constant 0 : index
    %c0_6 = arith.constant 0 : index
    %c0_7 = arith.constant 0 : index
    %2 = vector.load %arg3[%c0_5, %c0_6, %c0_7] : memref<1x8x32xf32, #tpu.memory_space<vmem>>, vector<1x8x32xf32>
    %3 = vector.shape_cast %0 : vector<1x8x32xf32> to vector<8x32xf32>
    %4 = arith.truncf %3 : vector<8x32xf32> to vector<8x32xbf16>
    %c0_8 = arith.constant 0 : index
    %c0_9 = arith.constant 0 : index
    %5 = vector.load %arg4[%c0_8, %c0_9] : memref<32x256xbf16, #tpu.memory_space<vmem>>, vector<32x256xbf16>
    %cst = arith.constant dense<0.000000e+00> : vector<8x256xf32>
    %6 = tpu.matmul %4, %5, %cst {dimension_numbers = #tpu.dot_dimension_numbers<[1], [0], [0], [1], [0, 0, 1, 1], [], []>} : vector<8x32xbf16>, vector<32x256xbf16>, vector<8x256xf32> -> vector<8x256xf32>
    %7 = vector.shape_cast %6 : vector<8x256xf32> to vector<1x8x256xf32>
    %8 = vector.shape_cast %1 : vector<1x8x32xf32> to vector<8x32xf32>
    %9 = arith.truncf %8 : vector<8x32xf32> to vector<8x32xbf16>
    %c0_10 = arith.constant 0 : index
    %c0_11 = arith.constant 0 : index
    %10 = vector.load %arg5[%c0_10, %c0_11] : memref<32x192xbf16, #tpu.memory_space<vmem>>, vector<32x192xbf16>
    %cst_12 = arith.constant dense<0.000000e+00> : vector<8x192xf32>
    %11 = tpu.matmul %9, %10, %cst_12 {dimension_numbers = #tpu.dot_dimension_numbers<[1], [0], [0], [1], [0, 0, 1, 1], [], []>} : vector<8x32xbf16>, vector<32x192xbf16>, vector<8x192xf32> -> vector<8x192xf32>
    %12 = vector.shape_cast %11 : vector<8x192xf32> to vector<1x8x192xf32>
    %13 = vector.shape_cast %2 : vector<1x8x32xf32> to vector<8x32xf32>
    %14 = arith.truncf %13 : vector<8x32xf32> to vector<8x32xbf16>
    %c0_13 = arith.constant 0 : index
    %c0_14 = arith.constant 0 : index
    %15 = vector.load %arg6[%c0_13, %c0_14] : memref<32x192xbf16, #tpu.memory_space<vmem>>, vector<32x192xbf16>
    %cst_15 = arith.constant dense<0.000000e+00> : vector<8x192xf32>
    %16 = tpu.matmul %14, %15, %cst_15 {dimension_numbers = #tpu.dot_dimension_numbers<[1], [0], [0], [1], [0, 0, 1, 1], [], []>} : vector<8x32xbf16>, vector<32x192xbf16>, vector<8x192xf32> -> vector<8x192xf32>
    %17 = vector.shape_cast %16 : vector<8x192xf32> to vector<1x8x192xf32>
    %18 = vector.extract_strided_slice %7 {offsets = [0, 0, 32], sizes = [1, 8, 32], strides = [1, 1, 1]} : vector<1x8x256xf32> to vector<1x8x32xf32>
    %19 = vector.extract_strided_slice %12 {offsets = [0, 0, 0], sizes = [1, 8, 32], strides = [1, 1, 1]} : vector<1x8x192xf32> to vector<1x8x32xf32>
    %20 = vector.extract_strided_slice %12 {offsets = [0, 0, 64], sizes = [1, 8, 32], strides = [1, 1, 1]} : vector<1x8x192xf32> to vector<1x8x32xf32>
    %21 = arith.truncf %18 : vector<1x8x32xf32> to vector<1x8x32xbf16>
    %22 = arith.truncf %19 : vector<1x8x32xf32> to vector<1x8x32xbf16>
    "tpu.trace_start"() <{level = 10 : i32, message = "bld,bmd->blm"}> : () -> ()
    %cst_16 = arith.constant dense<0.000000e+00> : vector<1x8x8xf32>
    %23 = tpu.matmul %21, %22, %cst_16 {dimension_numbers = #tpu.dot_dimension_numbers<[2], [2], [1], [1], [0, 0, 0, 1, 1, 1], [0], [0]>} : vector<1x8x32xbf16>, vector<1x8x32xbf16>, vector<1x8x8xf32> -> vector<1x8x8xf32>
    "tpu.trace_stop"() : () -> ()
    %cst_17 = arith.constant 0.176776692 : f32
    %24 = vector.broadcast %cst_17 : f32 to vector<1x8x8xf32>
    %25 = arith.mulf %23, %24 : vector<1x8x8xf32>
    %cst_18 = arith.constant dense<0xFF800000> : vector<1x8xf32>
    %26 = vector.multi_reduction <maximumf>, %25, %cst_18 [2] : vector<1x8x8xf32> to vector<1x8xf32>
    %27 = vector.shape_cast %26 : vector<1x8xf32> to vector<1x8x1xf32>
    %28 = vector.broadcast %27 : vector<1x8x1xf32> to vector<1x8x8xf32>
    %29 = arith.subf %25, %28 : vector<1x8x8xf32>
    %30 = math.exp %29 : vector<1x8x8xf32>
    %cst_19 = arith.constant dense<0.000000e+00> : vector<1x8xf32>
    %31 = vector.multi_reduction <add>, %30, %cst_19 [2] : vector<1x8x8xf32> to vector<1x8xf32>
    %32 = vector.shape_cast %31 : vector<1x8xf32> to vector<1x8x1xf32>
    %33 = tpu.reciprocal %32 {approx = true} : vector<1x8x1xf32> -> vector<1x8x1xf32>
    %34 = vector.broadcast %33 : vector<1x8x1xf32> to vector<1x8x8xf32>
    %35 = arith.mulf %30, %34 : vector<1x8x8xf32>
    %36 = arith.truncf %35 : vector<1x8x8xf32> to vector<1x8x8xbf16>
    %37 = arith.truncf %20 : vector<1x8x32xf32> to vector<1x8x32xbf16>
    "tpu.trace_start"() <{level = 10 : i32, message = "blm,bmd->bld"}> : () -> ()
    %cst_20 = arith.constant dense<0.000000e+00> : vector<1x8x32xf32>
    %38 = tpu.matmul %36, %37, %cst_20 {dimension_numbers = #tpu.dot_dimension_numbers<[2], [1], [1], [2], [0, 0, 0, 1, 1, 2], [0], [0]>} : vector<1x8x8xbf16>, vector<1x8x32xbf16>, vector<1x8x32xf32> -> vector<1x8x32xf32>
    "tpu.trace_stop"() : () -> ()
    %39 = arith.addf %38, %0 : vector<1x8x32xf32>
    %40 = vector.extract_strided_slice %12 {offsets = [0, 0, 32], sizes = [1, 8, 32], strides = [1, 1, 1]} : vector<1x8x192xf32> to vector<1x8x32xf32>
    %41 = vector.extract_strided_slice %7 {offsets = [0, 0, 0], sizes = [1, 8, 32], strides = [1, 1, 1]} : vector<1x8x256xf32> to vector<1x8x32xf32>
    %42 = vector.extract_strided_slice %7 {offsets = [0, 0, 64], sizes = [1, 8, 32], strides = [1, 1, 1]} : vector<1x8x256xf32> to vector<1x8x32xf32>
    %43 = arith.truncf %40 : vector<1x8x32xf32> to vector<1x8x32xbf16>
    %44 = arith.truncf %41 : vector<1x8x32xf32> to vector<1x8x32xbf16>
    "tpu.trace_start"() <{level = 10 : i32, message = "bld,bmd->blm"}> : () -> ()
    %cst_21 = arith.constant dense<0.000000e+00> : vector<1x8x8xf32>
    %45 = tpu.matmul %43, %44, %cst_21 {dimension_numbers = #tpu.dot_dimension_numbers<[2], [2], [1], [1], [0, 0, 0, 1, 1, 1], [0], [0]>} : vector<1x8x32xbf16>, vector<1x8x32xbf16>, vector<1x8x8xf32> -> vector<1x8x8xf32>
    "tpu.trace_stop"() : () -> ()
    %cst_22 = arith.constant 0.176776692 : f32
    %46 = vector.broadcast %cst_22 : f32 to vector<1x8x8xf32>
    %47 = arith.mulf %45, %46 : vector<1x8x8xf32>
    %cst_23 = arith.constant dense<0xFF800000> : vector<1x8xf32>
    %48 = vector.multi_reduction <maximumf>, %47, %cst_23 [2] : vector<1x8x8xf32> to vector<1x8xf32>
    %49 = vector.shape_cast %48 : vector<1x8xf32> to vector<1x8x1xf32>
    %50 = vector.broadcast %49 : vector<1x8x1xf32> to vector<1x8x8xf32>
    %51 = arith.subf %47, %50 : vector<1x8x8xf32>
    %52 = math.exp %51 : vector<1x8x8xf32>
    %cst_24 = arith.constant dense<0.000000e+00> : vector<1x8xf32>
    %53 = vector.multi_reduction <add>, %52, %cst_24 [2] : vector<1x8x8xf32> to vector<1x8xf32>
    %54 = vector.shape_cast %53 : vector<1x8xf32> to vector<1x8x1xf32>
    %55 = tpu.reciprocal %54 {approx = true} : vector<1x8x1xf32> -> vector<1x8x1xf32>
    %56 = vector.broadcast %55 : vector<1x8x1xf32> to vector<1x8x8xf32>
    %57 = arith.mulf %52, %56 : vector<1x8x8xf32>
    %58 = arith.truncf %57 : vector<1x8x8xf32> to vector<1x8x8xbf16>
    %59 = arith.truncf %42 : vector<1x8x32xf32> to vector<1x8x32xbf16>
    "tpu.trace_start"() <{level = 10 : i32, message = "blm,bmd->bld"}> : () -> ()
    %cst_25 = arith.constant dense<0.000000e+00> : vector<1x8x32xf32>
    %60 = tpu.matmul %58, %59, %cst_25 {dimension_numbers = #tpu.dot_dimension_numbers<[2], [1], [1], [2], [0, 0, 0, 1, 1, 2], [0], [0]>} : vector<1x8x8xbf16>, vector<1x8x32xbf16>, vector<1x8x32xf32> -> vector<1x8x32xf32>
    "tpu.trace_stop"() : () -> ()
    %61 = arith.addf %60, %1 : vector<1x8x32xf32>
    %62 = vector.extract_strided_slice %17 {offsets = [0, 0, 32], sizes = [1, 8, 32], strides = [1, 1, 1]} : vector<1x8x192xf32> to vector<1x8x32xf32>
    %63 = vector.extract_strided_slice %12 {offsets = [0, 0, 96], sizes = [1, 8, 32], strides = [1, 1, 1]} : vector<1x8x192xf32> to vector<1x8x32xf32>
    %64 = vector.extract_strided_slice %12 {offsets = [0, 0, 160], sizes = [1, 8, 32], strides = [1, 1, 1]} : vector<1x8x192xf32> to vector<1x8x32xf32>
    %65 = arith.truncf %62 : vector<1x8x32xf32> to vector<1x8x32xbf16>
    %66 = arith.truncf %63 : vector<1x8x32xf32> to vector<1x8x32xbf16>
    "tpu.trace_start"() <{level = 10 : i32, message = "bld,bmd->blm"}> : () -> ()
    %cst_26 = arith.constant dense<0.000000e+00> : vector<1x8x8xf32>
    %67 = tpu.matmul %65, %66, %cst_26 {dimension_numbers = #tpu.dot_dimension_numbers<[2], [2], [1], [1], [0, 0, 0, 1, 1, 1], [0], [0]>} : vector<1x8x32xbf16>, vector<1x8x32xbf16>, vector<1x8x8xf32> -> vector<1x8x8xf32>
    "tpu.trace_stop"() : () -> ()
    %cst_27 = arith.constant 0.176776692 : f32
    %68 = vector.broadcast %cst_27 : f32 to vector<1x8x8xf32>
    %69 = arith.mulf %67, %68 : vector<1x8x8xf32>
    %cst_28 = arith.constant dense<0xFF800000> : vector<1x8xf32>
    %70 = vector.multi_reduction <maximumf>, %69, %cst_28 [2] : vector<1x8x8xf32> to vector<1x8xf32>
    %71 = vector.shape_cast %70 : vector<1x8xf32> to vector<1x8x1xf32>
    %72 = vector.broadcast %71 : vector<1x8x1xf32> to vector<1x8x8xf32>
    %73 = arith.subf %69, %72 : vector<1x8x8xf32>
    %74 = math.exp %73 : vector<1x8x8xf32>
    %cst_29 = arith.constant dense<0.000000e+00> : vector<1x8xf32>
    %75 = vector.multi_reduction <add>, %74, %cst_29 [2] : vector<1x8x8xf32> to vector<1x8xf32>
    %76 = vector.shape_cast %75 : vector<1x8xf32> to vector<1x8x1xf32>
    %77 = tpu.reciprocal %76 {approx = true} : vector<1x8x1xf32> -> vector<1x8x1xf32>
    %78 = vector.broadcast %77 : vector<1x8x1xf32> to vector<1x8x8xf32>
    %79 = arith.mulf %74, %78 : vector<1x8x8xf32>
    %80 = arith.truncf %79 : vector<1x8x8xf32> to vector<1x8x8xbf16>
    %81 = arith.truncf %64 : vector<1x8x32xf32> to vector<1x8x32xbf16>
    "tpu.trace_start"() <{level = 10 : i32, message = "blm,bmd->bld"}> : () -> ()
    %cst_30 = arith.constant dense<0.000000e+00> : vector<1x8x32xf32>
    %82 = tpu.matmul %80, %81, %cst_30 {dimension_numbers = #tpu.dot_dimension_numbers<[2], [1], [1], [2], [0, 0, 0, 1, 1, 2], [0], [0]>} : vector<1x8x8xbf16>, vector<1x8x32xbf16>, vector<1x8x32xf32> -> vector<1x8x32xf32>
    "tpu.trace_stop"() : () -> ()
    %83 = arith.addf %82, %2 : vector<1x8x32xf32>
    %84 = vector.extract_strided_slice %12 {offsets = [0, 0, 128], sizes = [1, 8, 32], strides = [1, 1, 1]} : vector<1x8x192xf32> to vector<1x8x32xf32>
    %85 = vector.extract_strided_slice %17 {offsets = [0, 0, 0], sizes = [1, 8, 32], strides = [1, 1, 1]} : vector<1x8x192xf32> to vector<1x8x32xf32>
    %86 = vector.extract_strided_slice %17 {offsets = [0, 0, 64], sizes = [1, 8, 32], strides = [1, 1, 1]} : vector<1x8x192xf32> to vector<1x8x32xf32>
    %87 = arith.truncf %84 : vector<1x8x32xf32> to vector<1x8x32xbf16>
    %88 = arith.truncf %85 : vector<1x8x32xf32> to vector<1x8x32xbf16>
    "tpu.trace_start"() <{level = 10 : i32, message = "bld,bmd->blm"}> : () -> ()
    %cst_31 = arith.constant dense<0.000000e+00> : vector<1x8x8xf32>
    %89 = tpu.matmul %87, %88, %cst_31 {dimension_numbers = #tpu.dot_dimension_numbers<[2], [2], [1], [1], [0, 0, 0, 1, 1, 1], [0], [0]>} : vector<1x8x32xbf16>, vector<1x8x32xbf16>, vector<1x8x8xf32> -> vector<1x8x8xf32>
    "tpu.trace_stop"() : () -> ()
    %cst_32 = arith.constant 0.176776692 : f32
    %90 = vector.broadcast %cst_32 : f32 to vector<1x8x8xf32>
    %91 = arith.mulf %89, %90 : vector<1x8x8xf32>
    %cst_33 = arith.constant dense<0xFF800000> : vector<1x8xf32>
    %92 = vector.multi_reduction <maximumf>, %91, %cst_33 [2] : vector<1x8x8xf32> to vector<1x8xf32>
    %93 = vector.shape_cast %92 : vector<1x8xf32> to vector<1x8x1xf32>
    %94 = vector.broadcast %93 : vector<1x8x1xf32> to vector<1x8x8xf32>
    %95 = arith.subf %91, %94 : vector<1x8x8xf32>
    %96 = math.exp %95 : vector<1x8x8xf32>
    %cst_34 = arith.constant dense<0.000000e+00> : vector<1x8xf32>
    %97 = vector.multi_reduction <add>, %96, %cst_34 [2] : vector<1x8x8xf32> to vector<1x8xf32>
    %98 = vector.shape_cast %97 : vector<1x8xf32> to vector<1x8x1xf32>
    %99 = tpu.reciprocal %98 {approx = true} : vector<1x8x1xf32> -> vector<1x8x1xf32>
    %100 = vector.broadcast %99 : vector<1x8x1xf32> to vector<1x8x8xf32>
    %101 = arith.mulf %96, %100 : vector<1x8x8xf32>
    %102 = arith.truncf %101 : vector<1x8x8xf32> to vector<1x8x8xbf16>
    %103 = arith.truncf %86 : vector<1x8x32xf32> to vector<1x8x32xbf16>
    "tpu.trace_start"() <{level = 10 : i32, message = "blm,bmd->bld"}> : () -> ()
    %cst_35 = arith.constant dense<0.000000e+00> : vector<1x8x32xf32>
    %104 = tpu.matmul %102, %103, %cst_35 {dimension_numbers = #tpu.dot_dimension_numbers<[2], [1], [1], [2], [0, 0, 0, 1, 1, 2], [0], [0]>} : vector<1x8x8xbf16>, vector<1x8x32xbf16>, vector<1x8x32xf32> -> vector<1x8x32xf32>
    "tpu.trace_stop"() : () -> ()
    %105 = arith.addf %104, %1 : vector<1x8x32xf32>
    %106 = vector.extract_strided_slice %7 {offsets = [0, 0, 128], sizes = [1, 8, 32], strides = [1, 1, 1]} : vector<1x8x256xf32> to vector<1x8x32xf32>
    %107 = vector.extract_strided_slice %17 {offsets = [0, 0, 96], sizes = [1, 8, 32], strides = [1, 1, 1]} : vector<1x8x192xf32> to vector<1x8x32xf32>
    %108 = vector.extract_strided_slice %17 {offsets = [0, 0, 160], sizes = [1, 8, 32], strides = [1, 1, 1]} : vector<1x8x192xf32> to vector<1x8x32xf32>
    %109 = arith.truncf %106 : vector<1x8x32xf32> to vector<1x8x32xbf16>
    %110 = arith.truncf %107 : vector<1x8x32xf32> to vector<1x8x32xbf16>
    "tpu.trace_start"() <{level = 10 : i32, message = "bld,bmd->blm"}> : () -> ()
    %cst_36 = arith.constant dense<0.000000e+00> : vector<1x8x8xf32>
    %111 = tpu.matmul %109, %110, %cst_36 {dimension_numbers = #tpu.dot_dimension_numbers<[2], [2], [1], [1], [0, 0, 0, 1, 1, 1], [0], [0]>} : vector<1x8x32xbf16>, vector<1x8x32xbf16>, vector<1x8x8xf32> -> vector<1x8x8xf32>
    "tpu.trace_stop"() : () -> ()
    %cst_37 = arith.constant 0.176776692 : f32
    %112 = vector.broadcast %cst_37 : f32 to vector<1x8x8xf32>
    %113 = arith.mulf %111, %112 : vector<1x8x8xf32>
    %cst_38 = arith.constant dense<0xFF800000> : vector<1x8xf32>
    %114 = vector.multi_reduction <maximumf>, %113, %cst_38 [2] : vector<1x8x8xf32> to vector<1x8xf32>
    %115 = vector.shape_cast %114 : vector<1x8xf32> to vector<1x8x1xf32>
    %116 = vector.broadcast %115 : vector<1x8x1xf32> to vector<1x8x8xf32>
    %117 = arith.subf %113, %116 : vector<1x8x8xf32>
    %118 = math.exp %117 : vector<1x8x8xf32>
    %cst_39 = arith.constant dense<0.000000e+00> : vector<1x8xf32>
    %119 = vector.multi_reduction <add>, %118, %cst_39 [2] : vector<1x8x8xf32> to vector<1x8xf32>
    %120 = vector.shape_cast %119 : vector<1x8xf32> to vector<1x8x1xf32>
    %121 = tpu.reciprocal %120 {approx = true} : vector<1x8x1xf32> -> vector<1x8x1xf32>
    %122 = vector.broadcast %121 : vector<1x8x1xf32> to vector<1x8x8xf32>
    %123 = arith.mulf %118, %122 : vector<1x8x8xf32>
    %124 = arith.truncf %123 : vector<1x8x8xf32> to vector<1x8x8xbf16>
    %125 = arith.truncf %108 : vector<1x8x32xf32> to vector<1x8x32xbf16>
    "tpu.trace_start"() <{level = 10 : i32, message = "blm,bmd->bld"}> : () -> ()
    %cst_40 = arith.constant dense<0.000000e+00> : vector<1x8x32xf32>
    %126 = tpu.matmul %124, %125, %cst_40 {dimension_numbers = #tpu.dot_dimension_numbers<[2], [1], [1], [2], [0, 0, 0, 1, 1, 2], [0], [0]>} : vector<1x8x8xbf16>, vector<1x8x32xbf16>, vector<1x8x32xf32> -> vector<1x8x32xf32>
    "tpu.trace_stop"() : () -> ()
    %127 = arith.addf %126, %0 : vector<1x8x32xf32>
    %128 = vector.extract_strided_slice %17 {offsets = [0, 0, 128], sizes = [1, 8, 32], strides = [1, 1, 1]} : vector<1x8x192xf32> to vector<1x8x32xf32>
    %129 = vector.extract_strided_slice %7 {offsets = [0, 0, 96], sizes = [1, 8, 32], strides = [1, 1, 1]} : vector<1x8x256xf32> to vector<1x8x32xf32>
    %130 = vector.extract_strided_slice %7 {offsets = [0, 0, 160], sizes = [1, 8, 32], strides = [1, 1, 1]} : vector<1x8x256xf32> to vector<1x8x32xf32>
    %131 = arith.truncf %128 : vector<1x8x32xf32> to vector<1x8x32xbf16>
    %132 = arith.truncf %129 : vector<1x8x32xf32> to vector<1x8x32xbf16>
    "tpu.trace_start"() <{level = 10 : i32, message = "bld,bmd->blm"}> : () -> ()
    %cst_41 = arith.constant dense<0.000000e+00> : vector<1x8x8xf32>
    %133 = tpu.matmul %131, %132, %cst_41 {dimension_numbers = #tpu.dot_dimension_numbers<[2], [2], [1], [1], [0, 0, 0, 1, 1, 1], [0], [0]>} : vector<1x8x32xbf16>, vector<1x8x32xbf16>, vector<1x8x8xf32> -> vector<1x8x8xf32>
    "tpu.trace_stop"() : () -> ()
    %cst_42 = arith.constant 0.176776692 : f32
    %134 = vector.broadcast %cst_42 : f32 to vector<1x8x8xf32>
    %135 = arith.mulf %133, %134 : vector<1x8x8xf32>
    %cst_43 = arith.constant dense<0xFF800000> : vector<1x8xf32>
    %136 = vector.multi_reduction <maximumf>, %135, %cst_43 [2] : vector<1x8x8xf32> to vector<1x8xf32>
    %137 = vector.shape_cast %136 : vector<1x8xf32> to vector<1x8x1xf32>
    %138 = vector.broadcast %137 : vector<1x8x1xf32> to vector<1x8x8xf32>
    %139 = arith.subf %135, %138 : vector<1x8x8xf32>
    %140 = math.exp %139 : vector<1x8x8xf32>
    %cst_44 = arith.constant dense<0.000000e+00> : vector<1x8xf32>
    %141 = vector.multi_reduction <add>, %140, %cst_44 [2] : vector<1x8x8xf32> to vector<1x8xf32>
    %142 = vector.shape_cast %141 : vector<1x8xf32> to vector<1x8x1xf32>
    %143 = tpu.reciprocal %142 {approx = true} : vector<1x8x1xf32> -> vector<1x8x1xf32>
    %144 = vector.broadcast %143 : vector<1x8x1xf32> to vector<1x8x8xf32>
    %145 = arith.mulf %140, %144 : vector<1x8x8xf32>
    %146 = arith.truncf %145 : vector<1x8x8xf32> to vector<1x8x8xbf16>
    %147 = arith.truncf %130 : vector<1x8x32xf32> to vector<1x8x32xbf16>
    "tpu.trace_start"() <{level = 10 : i32, message = "blm,bmd->bld"}> : () -> ()
    %cst_45 = arith.constant dense<0.000000e+00> : vector<1x8x32xf32>
    %148 = tpu.matmul %146, %147, %cst_45 {dimension_numbers = #tpu.dot_dimension_numbers<[2], [1], [1], [2], [0, 0, 0, 1, 1, 2], [0], [0]>} : vector<1x8x8xbf16>, vector<1x8x32xbf16>, vector<1x8x32xf32> -> vector<1x8x32xf32>
    "tpu.trace_stop"() : () -> ()
    %149 = arith.addf %148, %2 : vector<1x8x32xf32>
    %150 = arith.addf %83, %105 : vector<1x8x32xf32>
    %151 = arith.addf %149, %127 : vector<1x8x32xf32>
    %152 = arith.addf %39, %61 : vector<1x8x32xf32>
    %153 = vector.extract_strided_slice %7 {offsets = [0, 0, 192], sizes = [1, 8, 32], strides = [1, 1, 1]} : vector<1x8x256xf32> to vector<1x8x32xf32>
    %154 = vector.extract_strided_slice %7 {offsets = [0, 0, 224], sizes = [1, 8, 32], strides = [1, 1, 1]} : vector<1x8x256xf32> to vector<1x8x32xf32>
    %155 = vector.shape_cast %150 : vector<1x8x32xf32> to vector<8x32xf32>
    %156 = arith.truncf %155 : vector<8x32xf32> to vector<8x32xbf16>
    %c0_46 = arith.constant 0 : index
    %c0_47 = arith.constant 0 : index
    %157 = vector.load %arg7[%c0_46, %c0_47] : memref<32x32xbf16, #tpu.memory_space<vmem>>, vector<32x32xbf16>
    %cst_48 = arith.constant dense<0.000000e+00> : vector<8x32xf32>
    %158 = tpu.matmul %156, %157, %cst_48 {dimension_numbers = #tpu.dot_dimension_numbers<[1], [0], [0], [1], [0, 0, 1, 1], [], []>} : vector<8x32xbf16>, vector<32x32xbf16>, vector<8x32xf32> -> vector<8x32xf32>
    %159 = vector.shape_cast %158 : vector<8x32xf32> to vector<1x8x32xf32>
    %160 = arith.truncf %159 : vector<1x8x32xf32> to vector<1x8x32xbf16>
    %161 = arith.truncf %153 : vector<1x8x32xf32> to vector<1x8x32xbf16>
    "tpu.trace_start"() <{level = 10 : i32, message = "bld,bmd->blm"}> : () -> ()
    %cst_49 = arith.constant dense<0.000000e+00> : vector<1x8x8xf32>
    %162 = tpu.matmul %160, %161, %cst_49 {dimension_numbers = #tpu.dot_dimension_numbers<[2], [2], [1], [1], [0, 0, 0, 1, 1, 1], [0], [0]>} : vector<1x8x32xbf16>, vector<1x8x32xbf16>, vector<1x8x8xf32> -> vector<1x8x8xf32>
    "tpu.trace_stop"() : () -> ()
    %cst_50 = arith.constant 0.176776692 : f32
    %163 = vector.broadcast %cst_50 : f32 to vector<1x8x8xf32>
    %164 = arith.mulf %162, %163 : vector<1x8x8xf32>
    %cst_51 = arith.constant dense<0xFF800000> : vector<1x8xf32>
    %165 = vector.multi_reduction <maximumf>, %164, %cst_51 [2] : vector<1x8x8xf32> to vector<1x8xf32>
    %166 = vector.shape_cast %165 : vector<1x8xf32> to vector<1x8x1xf32>
    %167 = vector.broadcast %166 : vector<1x8x1xf32> to vector<1x8x8xf32>
    %168 = arith.subf %164, %167 : vector<1x8x8xf32>
    %169 = math.exp %168 : vector<1x8x8xf32>
    %cst_52 = arith.constant dense<0.000000e+00> : vector<1x8xf32>
    %170 = vector.multi_reduction <add>, %169, %cst_52 [2] : vector<1x8x8xf32> to vector<1x8xf32>
    %171 = vector.shape_cast %170 : vector<1x8xf32> to vector<1x8x1xf32>
    %172 = tpu.reciprocal %171 {approx = true} : vector<1x8x1xf32> -> vector<1x8x1xf32>
    %173 = vector.broadcast %172 : vector<1x8x1xf32> to vector<1x8x8xf32>
    %174 = arith.mulf %169, %173 : vector<1x8x8xf32>
    %175 = arith.truncf %174 : vector<1x8x8xf32> to vector<1x8x8xbf16>
    %176 = arith.truncf %154 : vector<1x8x32xf32> to vector<1x8x32xbf16>
    "tpu.trace_start"() <{level = 10 : i32, message = "blm,bmd->bld"}> : () -> ()
    %cst_53 = arith.constant dense<0.000000e+00> : vector<1x8x32xf32>
    %177 = tpu.matmul %175, %176, %cst_53 {dimension_numbers = #tpu.dot_dimension_numbers<[2], [1], [1], [2], [0, 0, 0, 1, 1, 2], [0], [0]>} : vector<1x8x8xbf16>, vector<1x8x32xbf16>, vector<1x8x32xf32> -> vector<1x8x32xf32>
    "tpu.trace_stop"() : () -> ()
    %178 = tpu.concatenate %0, %1, %2, %152, %151, %150, %177 in 2 : vector<1x8x32xf32>, vector<1x8x32xf32>, vector<1x8x32xf32>, vector<1x8x32xf32>, vector<1x8x32xf32>, vector<1x8x32xf32>, vector<1x8x32xf32> -> vector<1x8x224xf32>
    %c0_54 = arith.constant 0 : index
    %c0_55 = arith.constant 0 : index
    %c0_56 = arith.constant 0 : index
    %179 = vector.load %arg8[%c0_54, %c0_55, %c0_56] : memref<1x8x224xf32, #tpu.memory_space<vmem>>, vector<1x8x224xf32>
    tpu.vector_store %arg8[%c0_54, %c0_55, %c0_56], %178 {strides = array<i32>} : memref<1x8x224xf32, #tpu.memory_space<vmem>>, vector<1x8x224xf32>,
    return
  }
  func.func @transform_0(%arg0: i32) -> (i32, i32, i32) {
    %c0_i32 = arith.constant 0 : i32
    %c0_i32_0 = arith.constant 0 : i32
    %c0_i32_1 = arith.constant 0 : i32
    return %arg0, %c0_i32, %c0_i32_0 : i32, i32, i32
  }
  func.func @transform_1(%arg0: i32) -> (i32, i32, i32) {
    %c0_i32 = arith.constant 0 : i32
    %c0_i32_0 = arith.constant 0 : i32
    %c0_i32_1 = arith.constant 0 : i32
    return %arg0, %c0_i32, %c0_i32_0 : i32, i32, i32
  }
  func.func @transform_2(%arg0: i32) -> (i32, i32, i32) {
    %c0_i32 = arith.constant 0 : i32
    %c0_i32_0 = arith.constant 0 : i32
    %c0_i32_1 = arith.constant 0 : i32
    return %arg0, %c0_i32, %c0_i32_0 : i32, i32, i32
  }
  func.func @transform_3(%arg0: i32) -> (i32, i32) {
    %c0_i32 = arith.constant 0 : i32
    %c0_i32_0 = arith.constant 0 : i32
    %c0_i32_1 = arith.constant 0 : i32
    return %c0_i32, %c0_i32_0 : i32, i32
  }
  func.func @transform_4(%arg0: i32) -> (i32, i32) {
    %c0_i32 = arith.constant 0 : i32
    %c0_i32_0 = arith.constant 0 : i32
    %c0_i32_1 = arith.constant 0 : i32
    return %c0_i32, %c0_i32_0 : i32, i32
  }
  func.func @transform_5(%arg0: i32) -> (i32, i32) {
    %c0_i32 = arith.constant 0 : i32
    %c0_i32_0 = arith.constant 0 : i32
    %c0_i32_1 = arith.constant 0 : i32
    return %c0_i32, %c0_i32_0 : i32, i32
  }
  func.func @transform_6(%arg0: i32) -> (i32, i32) {
    %c0_i32 = arith.constant 0 : i32
    %c0_i32_0 = arith.constant 0 : i32
    %c0_i32_1 = arith.constant 0 : i32
    return %c0_i32, %c0_i32_0 : i32, i32
  }
  func.func @transform_7(%arg0: i32) -> (i32, i32, i32) {
    %c0_i32 = arith.constant 0 : i32
    %c0_i32_0 = arith.constant 0 : i32
    %c0_i32_1 = arith.constant 0 : i32
    return %arg0, %c0_i32, %c0_i32_0 : i32, i32, i32
  }
}

</mosaic_0001>

<llo_original>
// kernel: tpu_custom_call.1
$region0: #{tpu_custom_call.1}
  #allocation0 [shape = 'u32[]', space=smem, size = 0x4, offset = 0x4, fixed_abs, tag = 'smem constant byte address 0x4 - core index']
  #allocation1 [shape = 'u32[72,128]{1,0:T(1,128)}', space=vmem, size = 0x9000, scoped, tag = 'internal scratch']
  %s0 = inlined_call_operand.hbm [shape: f32[2,8,32], index: 0, kind: input, shape index: {}]
  %s1 = inlined_call_operand.hbm [shape: f32[2,8,32], index: 1, kind: input, shape index: {}]
  %s2 = inlined_call_operand.hbm [shape: f32[2,8,32], index: 2, kind: input, shape index: {}]
  %s3 = inlined_call_operand.hbm [shape: bf16[32,256], index: 3, kind: input, shape index: {}]
  %s4 = inlined_call_operand.hbm [shape: bf16[32,192], index: 4, kind: input, shape index: {}]
  %s5 = inlined_call_operand.hbm [shape: bf16[32,192], index: 5, kind: input, shape index: {}]
  %s6 = inlined_call_operand.hbm [shape: bf16[32,32], index: 6, kind: input, shape index: {}]
  %s7 = inlined_call_operand.hbm [shape: f32[2,8,224], index: 7, kind: output, shape index: {}]
  %s8 = sld [smem:[#allocation0]]
  $region89: #{tpu_custom_call.1} parent=0
    _
  %s10 = ssub.s32 1, %s8
  %s11 = scalar_select 0, %s10, %s8
  $region1: #{tpu_custom_call.1} parent=0
    #allocation2 [shape = 'u8[8192]{0}', space=vmem, size = 0x2000, scoped, tag = 'input window, operand 0']
    #allocation3 [shape = 's32[2]{0}', space=sflag, size = 0x8, scoped, tag = 'scoped memory for tpu_custom_call.1']
    #allocation4 [shape = 's32[2]{0}', space=sflag, size = 0x8, scoped, tag = 'scoped memory for tpu_custom_call.1']
    #allocation5 [shape = 'u8[8192]{0}', space=vmem, size = 0x2000, scoped, tag = 'input window, operand 1']
    #allocation6 [shape = 's32[2]{0}', space=sflag, size = 0x8, scoped, tag = 'scoped memory for tpu_custom_call.1']
    #allocation7 [shape = 'u8[8192]{0}', space=vmem, size = 0x2000, scoped, tag = 'input window, operand 2']
    #allocation8 [shape = 'u8[16384]{0}', space=vmem, size = 0x4000, scoped, tag = 'input window, operand 3, single buffered']
    #allocation9 [shape = 's32[1]{0}', space=sflag, size = 0x4, scoped, tag = 'scoped memory for tpu_custom_call.1']
    #allocation10 [shape = 'u8[16384]{0}', space=vmem, size = 0x4000, scoped, tag = 'input window, operand 4, single buffered']
    #allocation11 [shape = 'u8[16384]{0}', space=vmem, size = 0x4000, scoped, tag = 'input window, operand 5, single buffered']
    #allocation12 [shape = 's32[1]{0}', space=sflag, size = 0x4, scoped, tag = 'scoped memory for tpu_custom_call.1']
    #allocation13 [shape = 'u8[8192]{0}', space=vmem, size = 0x2000, scoped, tag = 'input window, operand 6, single buffered']
    #allocation14 [shape = 'u8[16384]{0}', space=vmem, size = 0x4000, scoped, tag = 'output window, operand 0']
    %12 = vsyncpa [#allocation3], 0
    %s13 = scalar_lea.sflag [#allocation3], 1
    %14 = vsyncpa %s13, 0
    %15 = vsyncpa [#allocation6], 0
    %s16 = scalar_lea.sflag [#allocation6], 1
    %17 = vsyncpa %s16, 0
    %18 = vsyncpa [#allocation9], 0
    %19 = vsyncpa [#allocation12], 0
    %20 = vsyncpa [#allocation4], 0
    %s21 = scalar_lea.sflag [#allocation4], 1
    %22 = vsyncpa %s21, 0
    loop: start=0, step=1, limit=4
    $region2: #{tpu_custom_call.1} parent=1 // loop_pre_header
      _
    $region3: #{tpu_custom_call.1} parent=1 // loop_header
      %s24 = sphi 0, %s28
      %p25 = scmp.ge.s32.totalorder %s24, 4
      %s34 = sphi 0, %s36
      %s37 = sphi 0, %s34
      %s38 = sphi 0, %s37
      %s54 = sphi 0, %s38
      %s60 = sphi 0, %s62
      %s63 = sphi 0, %s60
      %s64 = sphi 0, %s63
      %s80 = sphi 0, %s64
      %s86 = sphi 0, %s88
      %s89 = sphi 0, %s86
      %s90 = sphi 0, %s89
      %s106 = sphi 0, %s90
      %s110 = sphi 0, %s110
      %s112 = sphi 0, %s110
      %s113 = sphi 0, %s112
      %s127 = sphi 0, %s113
      %s131 = sphi 0, %s131
      %s133 = sphi 0, %s131
      %s134 = sphi 0, %s133
      %s148 = sphi 0, %s134
      %s152 = sphi 0, %s152
      %s154 = sphi 0, %s152
      %s155 = sphi 0, %s154
      %s169 = sphi 0, %s155
      %s173 = sphi 0, %s173
      %s175 = sphi 0, %s173
      %s176 = sphi 0, %s175
      %s190 = sphi 0, %s176
      %s196 = sphi 0, %s198
      %s199 = sphi 0, %s196
      %s200 = sphi 0, %s199
      %s216 = sphi 0, %s200
    $region4: #{tpu_custom_call.1} parent=1 // loop_header_branch
      %27 = sbr.rel (%p25) target = $region8
    $region5: #{tpu_custom_call.1} parent=1 // loop_body
      %s29 = ssub.s32 %s24, 1
      %s30 = ssub.s32 %s24, 2
      %s31 = sadd.s32 %s24, 1
      %s32 = ssub.s32 %s24, %s31
      %p33 = scmp.eq.s32.totalorder %s32, 0
      %s35 = sadd.s32 %s34, 1
      %s36 = scalar_select %p33, %s34, %s35
      %p39 = pneg %p33
      %p40 = scmp.eq.s32.totalorder %s24, 1
      %p41 = por %p39, %p40
      %p42 = scmp.ne.s32.totalorder %s34, %s37
      %p43 = scmp.eq.s32.totalorder %s24, 0
      %p44 = por %p42, %p43
      %p45 = scmp.ne.s32.totalorder %s34, %s37
      %p46 = scmp.eq.s32.totalorder %s29, 1
      %p47 = por %p45, %p46
      %p48 = scmp.ne.s32.totalorder %s37, %s38
      %p49 = scmp.eq.s32.totalorder %s29, 0
      %p50 = por %p48, %p49
      %p51 = scmp.ne.s32.totalorder %s37, %s38
      %p52 = scmp.eq.s32.totalorder %s30, 1
      %p53 = por %p51, %p52
      %p55 = scmp.ne.s32.totalorder %s38, %s54
      %p56 = scmp.eq.s32.totalorder %s30, 0
      %p57 = por %p55, %p56
      %s58 = ssub.s32 %s24, %s31
      %p59 = scmp.eq.s32.totalorder %s58, 0
      %s61 = sadd.s32 %s60, 1
      %s62 = scalar_select %p59, %s60, %s61
      %p65 = pneg %p59
      %p66 = scmp.eq.s32.totalorder %s24, 1
      %p67 = por %p65, %p66
      %p68 = scmp.ne.s32.totalorder %s60, %s63
      %p69 = scmp.eq.s32.totalorder %s24, 0
      %p70 = por %p68, %p69
      %p71 = scmp.ne.s32.totalorder %s60, %s63
      %p72 = scmp.eq.s32.totalorder %s29, 1
      %p73 = por %p71, %p72
      %p74 = scmp.ne.s32.totalorder %s63, %s64
      %p75 = scmp.eq.s32.totalorder %s29, 0
      %p76 = por %p74, %p75
      %p77 = scmp.ne.s32.totalorder %s63, %s64
      %p78 = scmp.eq.s32.totalorder %s30, 1
      %p79 = por %p77, %p78
      %p81 = scmp.ne.s32.totalorder %s64, %s80
      %p82 = scmp.eq.s32.totalorder %s30, 0
      %p83 = por %p81, %p82
      %s84 = ssub.s32 %s24, %s31
      %p85 = scmp.eq.s32.totalorder %s84, 0
      %s87 = sadd.s32 %s86, 1
      %s88 = scalar_select %p85, %s86, %s87
      %p91 = pneg %p85
      %p92 = scmp.eq.s32.totalorder %s24, 1
      %p93 = por %p91, %p92
      %p94 = scmp.ne.s32.totalorder %s86, %s89
      %p95 = scmp.eq.s32.totalorder %s24, 0
      %p96 = por %p94, %p95
      %p97 = scmp.ne.s32.totalorder %s86, %s89
      %p98 = scmp.eq.s32.totalorder %s29, 1
      %p99 = por %p97, %p98
      %p100 = scmp.ne.s32.totalorder %s89, %s90
      %p101 = scmp.eq.s32.totalorder %s29, 0
      %p102 = por %p100, %p101
      %p103 = scmp.ne.s32.totalorder %s89, %s90
      %p104 = scmp.eq.s32.totalorder %s30, 1
      %p105 = por %p103, %p104
      %p107 = scmp.ne.s32.totalorder %s90, %s106
      %p108 = scmp.eq.s32.totalorder %s30, 0
      %p109 = por %p107, %p108
      %s111 = sadd.s32 %s110, 1
      %p114 = scmp.eq.s32.totalorder %s24, 1
      %p115 = scmp.ne.s32.totalorder %s110, %s112
      %p116 = scmp.eq.s32.totalorder %s24, 0
      %p117 = por %p115, %p116
      %p118 = scmp.ne.s32.totalorder %s110, %s112
      %p119 = scmp.eq.s32.totalorder %s29, 1
      %p120 = por %p118, %p119
      %p121 = scmp.ne.s32.totalorder %s112, %s113
      %p122 = scmp.eq.s32.totalorder %s29, 0
      %p123 = por %p121, %p122
      %p124 = scmp.ne.s32.totalorder %s112, %s113
      %p125 = scmp.eq.s32.totalorder %s30, 1
      %p126 = por %p124, %p125
      %p128 = scmp.ne.s32.totalorder %s113, %s127
      %p129 = scmp.eq.s32.totalorder %s30, 0
      %p130 = por %p128, %p129
      %s132 = sadd.s32 %s131, 1
      %p135 = scmp.eq.s32.totalorder %s24, 1
      %p136 = scmp.ne.s32.totalorder %s131, %s133
      %p137 = scmp.eq.s32.totalorder %s24, 0
      %p138 = por %p136, %p137
      %p139 = scmp.ne.s32.totalorder %s131, %s133
      %p140 = scmp.eq.s32.totalorder %s29, 1
      %p141 = por %p139, %p140
      %p142 = scmp.ne.s32.totalorder %s133, %s134
      %p143 = scmp.eq.s32.totalorder %s29, 0
      %p144 = por %p142, %p143
      %p145 = scmp.ne.s32.totalorder %s133, %s134
      %p146 = scmp.eq.s32.totalorder %s30, 1
      %p147 = por %p145, %p146
      %p149 = scmp.ne.s32.totalorder %s134, %s148
      %p150 = scmp.eq.s32.totalorder %s30, 0
      %p151 = por %p149, %p150
      %s153 = sadd.s32 %s152, 1
      %p156 = scmp.eq.s32.totalorder %s24, 1
      %p157 = scmp.ne.s32.totalorder %s152, %s154
      %p158 = scmp.eq.s32.totalorder %s24, 0
      %p159 = por %p157, %p158
      %p160 = scmp.ne.s32.totalorder %s152, %s154
      %p161 = scmp.eq.s32.totalorder %s29, 1
      %p162 = por %p160, %p161
      %p163 = scmp.ne.s32.totalorder %s154, %s155
      %p164 = scmp.eq.s32.totalorder %s29, 0
      %p165 = por %p163, %p164
      %p166 = scmp.ne.s32.totalorder %s154, %s155
      %p167 = scmp.eq.s32.totalorder %s30, 1
      %p168 = por %p166, %p167
      %p170 = scmp.ne.s32.totalorder %s155, %s169
      %p171 = scmp.eq.s32.totalorder %s30, 0
      %p172 = por %p170, %p171
      %s174 = sadd.s32 %s173, 1
      %p177 = scmp.eq.s32.totalorder %s24, 1
      %p178 = scmp.ne.s32.totalorder %s173, %s175
      %p179 = scmp.eq.s32.totalorder %s24, 0
      %p180 = por %p178, %p179
      %p181 = scmp.ne.s32.totalorder %s173, %s175
      %p182 = scmp.eq.s32.totalorder %s29, 1
      %p183 = por %p181, %p182
      %p184 = scmp.ne.s32.totalorder %s175, %s176
      %p185 = scmp.eq.s32.totalorder %s29, 0
      %p186 = por %p184, %p185
      %p187 = scmp.ne.s32.totalorder %s175, %s176
      %p188 = scmp.eq.s32.totalorder %s30, 1
      %p189 = por %p187, %p188
      %p191 = scmp.ne.s32.totalorder %s176, %s190
      %p192 = scmp.eq.s32.totalorder %s30, 0
      %p193 = por %p191, %p192
      %s194 = ssub.s32 %s24, %s31
      %p195 = scmp.eq.s32.totalorder %s194, 0
      %s197 = sadd.s32 %s196, 1
      %s198 = scalar_select %p195, %s196, %s197
      %p201 = pneg %p195
      %p202 = scmp.eq.s32.totalorder %s24, 1
      %p203 = por %p201, %p202
      %p204 = scmp.ne.s32.totalorder %s196, %s199
      %p205 = scmp.eq.s32.totalorder %s24, 0
      %p206 = por %p204, %p205
      %p207 = scmp.ne.s32.totalorder %s196, %s199
      %p208 = scmp.eq.s32.totalorder %s29, 1
      %p209 = por %p207, %p208
      %p210 = scmp.ne.s32.totalorder %s199, %s200
      %p211 = scmp.eq.s32.totalorder %s29, 0
      %p212 = por %p210, %p211
      %p213 = scmp.ne.s32.totalorder %s199, %s200
      %p214 = scmp.eq.s32.totalorder %s30, 1
      %p215 = por %p213, %p214
      %p217 = scmp.ne.s32.totalorder %s200, %s216
      %p218 = scmp.eq.s32.totalorder %s30, 0
      %p219 = por %p217, %p218
      %p220 = scmp.le.s32.totalorder 1, %s24
      %p221 = scmp.lt.s32.totalorder %s24, 3
      %p222 = pnand %p220, %p221
      %p223 = pneg %p222
      // Predicated region
      $region9: #{tpu_custom_call.1} parent=5 // pred_check
        _
      $region10: #{tpu_custom_call.1} parent=5 // pred_check_branch
        %225 = sbr.rel (%p222) target = $region12
      $region11: #{tpu_custom_call.1} parent=5 // pred_region
        %s226 = ssub.s32 %s24, 1
        // Predicated region
        $region13: #{tpu_custom_call.1} parent=11 // pred_check
          %p227 = pneg %p123
        $region14: #{tpu_custom_call.1} parent=11 // pred_check_branch
          %229 = sbr.rel (%p227) target = $region16
        $region15: #{tpu_custom_call.1} parent=11 // pred_region
          %231 = vsyncadd [#allocation9], 0
          %s232 = sshll.u32 %s3, 4
          %s233 = int_to_ptr.hbm [resolvable:$true] %s232
          %s234 = sshll.u32 [#allocation8], 4
          %s235 = int_to_ptr.vmem [resolvable:$true] %s234
          %240 = dma.hbm_to_vmem [thread:$0]  %s233, 512, %s235, [#allocation9], 128, 128, 8
        $region16: #{tpu_custom_call.1} parent=11 // pred_fallthru
          _
        // Predicated region
        $region17: #{tpu_custom_call.1} parent=11 // pred_check
          %p241 = pneg %p144
        $region18: #{tpu_custom_call.1} parent=11 // pred_check_branch
          %243 = sbr.rel (%p241) target = $region20
        $region19: #{tpu_custom_call.1} parent=11 // pred_region
          %245 = vsyncadd [#allocation9], 0
          %s246 = sshll.u32 %s4, 4
          %s247 = int_to_ptr.hbm [resolvable:$true] %s246
          %s248 = sshll.u32 [#allocation10], 4
          %s249 = int_to_ptr.vmem [resolvable:$true] %s248
          %254 = dma.hbm_to_vmem [thread:$0]  %s247, 512, %s249, [#allocation9], 128, 128, 8
        $region20: #{tpu_custom_call.1} parent=11 // pred_fallthru
          _
        // Predicated region
        $region21: #{tpu_custom_call.1} parent=11 // pred_check
          %p255 = pneg %p165
        $region22: #{tpu_custom_call.1} parent=11 // pred_check_branch
          %257 = sbr.rel (%p255) target = $region24
        $region23: #{tpu_custom_call.1} parent=11 // pred_region
          %259 = vsyncadd [#allocation12], 0
          %s260 = sshll.u32 %s5, 4
          %s261 = int_to_ptr.hbm [resolvable:$true] %s260
          %s262 = sshll.u32 [#allocation11], 4
          %s263 = int_to_ptr.vmem [resolvable:$true] %s262
          %268 = dma.hbm_to_vmem [thread:$0]  %s261, 512, %s263, [#allocation12], 128, 128, 8
        $region24: #{tpu_custom_call.1} parent=11 // pred_fallthru
          _
        // Predicated region
        $region25: #{tpu_custom_call.1} parent=11 // pred_check
          %p269 = pneg %p186
        $region26: #{tpu_custom_call.1} parent=11 // pred_check_branch
          %271 = sbr.rel (%p269) target = $region28
        $region27: #{tpu_custom_call.1} parent=11 // pred_region
          %273 = vsyncadd [#allocation12], 0
          %s274 = sshll.u32 %s6, 4
          %s275 = int_to_ptr.hbm [resolvable:$true] %s274
          %s276 = sshll.u32 [#allocation13], 4
          %s277 = int_to_ptr.vmem [resolvable:$true] %s276
          %282 = dma.hbm_to_vmem [thread:$0]  %s275, 256, %s277, [#allocation12], 64, 64, 4
        $region28: #{tpu_custom_call.1} parent=11 // pred_fallthru
          _
      $region12: #{tpu_custom_call.1} parent=5 // pred_fallthru
        _
      %p283 = scmp.lt.s32.totalorder %s24, 2
      // Predicated region
      $region29: #{tpu_custom_call.1} parent=5 // pred_check
        %p284 = pneg %p283
      $region30: #{tpu_custom_call.1} parent=5 // pred_check_branch
        %286 = sbr.rel (%p284) target = $region32
      $region31: #{tpu_custom_call.1} parent=5 // pred_region
        // Predicated region
        $region33: #{tpu_custom_call.1} parent=31 // pred_check
          %p287 = pneg %p44
        $region34: #{tpu_custom_call.1} parent=31 // pred_check_branch
          %289 = sbr.rel (%p287) target = $region36
        $region35: #{tpu_custom_call.1} parent=31 // pred_region
          %s290 = sand.u32 %s34, 1
          %s291 = scalar_lea.sflag [#allocation3], %s290
          %s292 = sand.u32 %s34, 1
          %s293 = smul.addr %s292, 8
          %s294 = scalar_lea.vmem [#allocation2], %s293
          %296 = vsyncadd %s291, 0
          %s297 = smul.addr %s24, 8
          %s298 = scalar_lea.hbm %s0, %s297
          %s300 = sshll.u32 %s298, 4
          %s301 = int_to_ptr.hbm [resolvable:$true] %s300
          %s302 = sshll.u32 %s294, 4
          %s303 = int_to_ptr.vmem [resolvable:$true] %s302
          %305 = dma.hbm_to_vmem [thread:$0]  %s301, 128, %s303, %s291
        $region36: #{tpu_custom_call.1} parent=31 // pred_fallthru
          _
        // Predicated region
        $region37: #{tpu_custom_call.1} parent=31 // pred_check
          %p306 = pneg %p70
        $region38: #{tpu_custom_call.1} parent=31 // pred_check_branch
          %308 = sbr.rel (%p306) target = $region40
        $region39: #{tpu_custom_call.1} parent=31 // pred_region
          %s309 = sand.u32 %s24, 1
          %s310 = scalar_lea.sflag [#allocation6], %s309
          %s311 = sand.u32 %s60, 1
          %s312 = smul.addr %s311, 8
          %s313 = scalar_lea.vmem [#allocation5], %s312
          %315 = vsyncadd %s310, 0
          %s316 = smul.addr %s24, 8
          %s317 = scalar_lea.hbm %s1, %s316
          %s319 = sshll.u32 %s317, 4
          %s320 = int_to_ptr.hbm [resolvable:$true] %s319
          %s321 = sshll.u32 %s313, 4
          %s322 = int_to_ptr.vmem [resolvable:$true] %s321
          %324 = dma.hbm_to_vmem [thread:$0]  %s320, 128, %s322, %s310
        $region40: #{tpu_custom_call.1} parent=31 // pred_fallthru
          _
        // Predicated region
        $region41: #{tpu_custom_call.1} parent=31 // pred_check
          %p325 = pneg %p96
        $region42: #{tpu_custom_call.1} parent=31 // pred_check_branch
          %327 = sbr.rel (%p325) target = $region44
        $region43: #{tpu_custom_call.1} parent=31 // pred_region
          %s328 = sand.u32 %s24, 1
          %s329 = scalar_lea.sflag [#allocation6], %s328
          %s330 = sand.u32 %s86, 1
          %s331 = smul.addr %s330, 8
          %s332 = scalar_lea.vmem [#allocation7], %s331
          %334 = vsyncadd %s329, 0
          %s335 = smul.addr %s24, 8
          %s336 = scalar_lea.hbm %s2, %s335
          %s338 = sshll.u32 %s336, 4
          %s339 = int_to_ptr.hbm [resolvable:$true] %s338
          %s340 = sshll.u32 %s332, 4
          %s341 = int_to_ptr.vmem [resolvable:$true] %s340
          %343 = dma.hbm_to_vmem [thread:$0]  %s339, 128, %s341, %s329
        $region44: #{tpu_custom_call.1} parent=31 // pred_fallthru
          _
      $region32: #{tpu_custom_call.1} parent=5 // pred_fallthru
        _
      %p344 = scmp.le.s32.totalorder 1, %s24
      %p345 = scmp.lt.s32.totalorder %s24, 3
      %p346 = pnand %p344, %p345
      %p347 = pneg %p346
      // Predicated region
      $region45: #{tpu_custom_call.1} parent=5 // pred_check
        _
      $region46: #{tpu_custom_call.1} parent=5 // pred_check_branch
        %349 = sbr.rel (%p346) target = $region48
      $region47: #{tpu_custom_call.1} parent=5 // pred_region
        %s350 = ssub.s32 %s24, 1
        %s351 = sand.u32 %s37, 1
        %s352 = scalar_lea.sflag [#allocation3], %s351
        %s353 = sand.u32 %s37, 1
        %s354 = smul.addr %s353, 8
        %s355 = scalar_lea.vmem [#allocation2], %s354
        // Predicated region
        $region49: #{tpu_custom_call.1} parent=47 // pred_check
          %p356 = pneg %p50
        $region50: #{tpu_custom_call.1} parent=47 // pred_check_branch
          %358 = sbr.rel (%p356) target = $region52
        $region51: #{tpu_custom_call.1} parent=47 // pred_region
          %360 = dma.done %s352, 128
        $region52: #{tpu_custom_call.1} parent=47 // pred_fallthru
          _
        %s361 = sand.u32 %s29, 1
        %s362 = scalar_lea.sflag [#allocation6], %s361
        %s363 = sand.u32 %s63, 1
        %s364 = smul.addr %s363, 8
        %s365 = scalar_lea.vmem [#allocation5], %s364
        // Predicated region
        $region53: #{tpu_custom_call.1} parent=47 // pred_check
          %p366 = pneg %p76
        $region54: #{tpu_custom_call.1} parent=47 // pred_check_branch
          %368 = sbr.rel (%p366) target = $region56
        $region55: #{tpu_custom_call.1} parent=47 // pred_region
          %370 = dma.done %s362, 128
        $region56: #{tpu_custom_call.1} parent=47 // pred_fallthru
          _
        %s371 = sand.u32 %s29, 1
        %s372 = scalar_lea.sflag [#allocation6], %s371
        %s373 = sand.u32 %s89, 1
        %s374 = smul.addr %s373, 8
        %s375 = scalar_lea.vmem [#allocation7], %s374
        // Predicated region
        $region57: #{tpu_custom_call.1} parent=47 // pred_check
          %p376 = pneg %p102
        $region58: #{tpu_custom_call.1} parent=47 // pred_check_branch
          %378 = sbr.rel (%p376) target = $region60
        $region59: #{tpu_custom_call.1} parent=47 // pred_region
          %380 = dma.done %s372, 128
        $region60: #{tpu_custom_call.1} parent=47 // pred_fallthru
          _
        // Predicated region
        $region61: #{tpu_custom_call.1} parent=47 // pred_check
          %p381 = pneg %p123
        $region62: #{tpu_custom_call.1} parent=47 // pred_check_branch
          %383 = sbr.rel (%p381) target = $region64
        $region63: #{tpu_custom_call.1} parent=47 // pred_region
          %385 = dma.done [#allocation9], 512
        $region64: #{tpu_custom_call.1} parent=47 // pred_fallthru
          _
        // Predicated region
        $region65: #{tpu_custom_call.1} parent=47 // pred_check
          %p386 = pneg %p144
        $region66: #{tpu_custom_call.1} parent=47 // pred_check_branch
          %388 = sbr.rel (%p386) target = $region68
        $region67: #{tpu_custom_call.1} parent=47 // pred_region
          %390 = dma.done [#allocation9], 512
        $region68: #{tpu_custom_call.1} parent=47 // pred_fallthru
          _
        // Predicated region
        $region69: #{tpu_custom_call.1} parent=47 // pred_check
          %p391 = pneg %p165
        $region70: #{tpu_custom_call.1} parent=47 // pred_check_branch
          %393 = sbr.rel (%p391) target = $region72
        $region71: #{tpu_custom_call.1} parent=47 // pred_region
          %395 = dma.done [#allocation12], 512
        $region72: #{tpu_custom_call.1} parent=47 // pred_fallthru
          _
        // Predicated region
        $region73: #{tpu_custom_call.1} parent=47 // pred_check
          %p396 = pneg %p186
        $region74: #{tpu_custom_call.1} parent=47 // pred_check_branch
          %398 = sbr.rel (%p396) target = $region76
        $region75: #{tpu_custom_call.1} parent=47 // pred_region
          %400 = dma.done [#allocation12], 256
        $region76: #{tpu_custom_call.1} parent=47 // pred_fallthru
          _
        %s401 = sand.u32 %s37, 1
        %s402 = scalar_lea.sflag [#allocation3], %s401
        %s403 = sand.u32 %s37, 1
        %s404 = smul.addr %s403, 8
        %s405 = scalar_lea.vmem [#allocation2], %s404
        %p406 = pneg %p50
        %p407 = pneg %p47
        %s408 = sand.u32 %s29, 1
        %s409 = scalar_lea.sflag [#allocation6], %s408
        %s410 = sand.u32 %s63, 1
        %s411 = smul.addr %s410, 8
        %s412 = scalar_lea.vmem [#allocation5], %s411
        %p413 = pneg %p76
        %p414 = pneg %p73
        %s415 = sand.u32 %s29, 1
        %s416 = scalar_lea.sflag [#allocation6], %s415
        %s417 = sand.u32 %s89, 1
        %s418 = smul.addr %s417, 8
        %s419 = scalar_lea.vmem [#allocation7], %s418
        %p420 = pneg %p102
        %p421 = pneg %p99
        %p422 = pneg %p123
        %p423 = pneg %p120
        %p424 = pneg %p144
        %p425 = pneg %p141
        %p426 = pneg %p165
        %p427 = pneg %p162
        %p428 = pneg %p186
        %p429 = pneg %p183
        %p430 = pneg %p212
        %p431 = pneg %p209
        %s432 = sand.u32 %s199, 1
        %s433 = scalar_lea.sflag [#allocation4], %s432
        %s434 = sand.u32 %s199, 1
        %s435 = smul.addr %s434, 16
        %s436 = scalar_lea.vmem [#allocation14], %s435
        %v438 = vld [vmem:[%s355] sm:$0xff]
        %v439 = vld [vmem:[%s365] sm:$0xff]
        %v440 = vld [vmem:[%s375] sm:$0xff]
        %v441 = vpack.c.bf16 %v438, %v438
        %v442 = vld [vmem:[#allocation8] sm:$0xff]
        %v443 = vld [vmem:[#allocation8 + $0x8] sm:$0xff]
        %v444 = vld [vmem:[#allocation8 + $0x10] sm:$0xff]
        %v445 = vld [vmem:[#allocation8 + $0x18] sm:$0xff]
        %v450 = vunpack.c.l.b16 %v442
        %v451 = vunpack.c.h.b16 %v442
        %v452 = vunpack.c.l.b16 %v443
        %v453 = vunpack.c.h.b16 %v443
        %v454 = vunpack.c.l.b16 %v444
        %v455 = vunpack.c.h.b16 %v444
        %v456 = vunpack.c.l.b16 %v445
        %v457 = vunpack.c.h.b16 %v445
        %v458 = vpack.c.b16 %v452, %v450
        %v459 = vpack.c.b16 %v453, %v451
        %v460 = vpack.c.b16 %v456, %v454
        %v461 = vpack.c.b16 %v457, %v455
        %vm466 = vcmask 261120
        %v468 = vsel %vm466, %v441, 0
        %470 = vmatpush.bf16.msra.mxu0 0
        %471 = vmatpush.bf16.msra.mxu0 0
        %472 = vmatpush.bf16.msra.mxu0 0
        %473 = vmatpush.bf16.msra.mxu0 0
        %474 = vmatpush.bf16.msra.mxu0 0
        %475 = vmatpush.bf16.msra.mxu0 0
        %476 = vmatpush.bf16.msra.mxu0 %v460
        %477 = vmatpush.bf16.msra.mxu0 %v458
        %478 = vmatmul.bf16.gmra.mxu0 %v468
        %v479 = vpop.f32.mrf.mxu0
        %v480 = vadd.f32 0.0, %v479
        %v481 = vpop.f32.mrf.mxu0
        %482 = vdwg.mxu0
        %483 = vmatpush.bf16.msra.mxu0 0
        %484 = vmatpush.bf16.msra.mxu0 0
        %485 = vmatpush.bf16.msra.mxu0 0
        %486 = vmatpush.bf16.msra.mxu0 0
        %487 = vmatpush.bf16.msra.mxu0 0
        %488 = vmatpush.bf16.msra.mxu0 0
        %489 = vmatpush.bf16.msra.mxu0 %v461
        %490 = vmatpush.bf16.msra.mxu0 %v459
        %491 = vmatmul.bf16.gmra.mxu0 %v468
        %v492 = vpop.f32.mrf.mxu0
        %v493 = vadd.f32 0.0, %v492
        %v494 = vpop.f32.mrf.mxu0
        %495 = vdwg.mxu0
        %v496 = vpack.c.bf16 %v439, %v439
        %v497 = vld [vmem:[#allocation10] sm:$0xff]
        %v498 = vld [vmem:[#allocation10 + $0x8] sm:$0xff]
        %v499 = vld [vmem:[#allocation10 + $0x10] sm:$0xff]
        %v500 = vld [vmem:[#allocation10 + $0x18] sm:$0xff]
        %v505 = vunpack.c.l.b16 %v497
        %v506 = vunpack.c.h.b16 %v497
        %v507 = vunpack.c.l.b16 %v498
        %v508 = vunpack.c.h.b16 %v498
        %v509 = vunpack.c.l.b16 %v499
        %v510 = vunpack.c.h.b16 %v499
        %v511 = vunpack.c.l.b16 %v500
        %v512 = vunpack.c.h.b16 %v500
        %v513 = vpack.c.b16 %v507, %v505
        %v514 = vpack.c.b16 %v508, %v506
        %v515 = vpack.c.b16 %v511, %v509
        %v516 = vpack.c.b16 %v512, %v510
        %v522 = vsel %vm466, %v496, 0
        %524 = vmatpush.bf16.msra.mxu0 0
        %525 = vmatpush.bf16.msra.mxu0 0
        %526 = vmatpush.bf16.msra.mxu0 0
        %527 = vmatpush.bf16.msra.mxu0 0
        %528 = vmatpush.bf16.msra.mxu0 0
        %529 = vmatpush.bf16.msra.mxu0 0
        %530 = vmatpush.bf16.msra.mxu0 %v515
        %531 = vmatpush.bf16.msra.mxu0 %v513
        %532 = vmatmul.bf16.gmra.mxu0 %v522
        %v533 = vpop.f32.mrf.mxu0
        %v534 = vadd.f32 0.0, %v533
        %v535 = vpop.f32.mrf.mxu0
        %536 = vdwg.mxu0
        %537 = vmatpush.bf16.msra.mxu0 0
        %538 = vmatpush.bf16.msra.mxu0 0
        %539 = vmatpush.bf16.msra.mxu0 0
        %540 = vmatpush.bf16.msra.mxu0 0
        %541 = vmatpush.bf16.msra.mxu0 0
        %542 = vmatpush.bf16.msra.mxu0 0
        %543 = vmatpush.bf16.msra.mxu0 %v516
        %544 = vmatpush.bf16.msra.mxu0 %v514
        %545 = vmatmul.bf16.gmra.mxu0 %v522
        %v546 = vpop.f32.mrf.mxu0
        %v547 = vadd.f32 0.0, %v546
        %v548 = vpop.f32.mrf.mxu0
        %549 = vdwg.mxu0
        %v550 = vpack.c.bf16 %v440, %v440
        %v551 = vld [vmem:[#allocation11] sm:$0xff]
        %v552 = vld [vmem:[#allocation11 + $0x8] sm:$0xff]
        %v553 = vld [vmem:[#allocation11 + $0x10] sm:$0xff]
        %v554 = vld [vmem:[#allocation11 + $0x18] sm:$0xff]
        %v559 = vunpack.c.l.b16 %v551
        %v560 = vunpack.c.h.b16 %v551
        %v561 = vunpack.c.l.b16 %v552
        %v562 = vunpack.c.h.b16 %v552
        %v563 = vunpack.c.l.b16 %v553
        %v564 = vunpack.c.h.b16 %v553
        %v565 = vunpack.c.l.b16 %v554
        %v566 = vunpack.c.h.b16 %v554
        %v567 = vpack.c.b16 %v561, %v559
        %v568 = vpack.c.b16 %v562, %v560
        %v569 = vpack.c.b16 %v565, %v563
        %v570 = vpack.c.b16 %v566, %v564
        %v576 = vsel %vm466, %v550, 0
        %578 = vmatpush.bf16.msra.mxu0 0
        %579 = vmatpush.bf16.msra.mxu0 0
        %580 = vmatpush.bf16.msra.mxu0 0
        %581 = vmatpush.bf16.msra.mxu0 0
        %582 = vmatpush.bf16.msra.mxu0 0
        %583 = vmatpush.bf16.msra.mxu0 0
        %584 = vmatpush.bf16.msra.mxu0 %v569
        %585 = vmatpush.bf16.msra.mxu0 %v567
        %586 = vmatmul.bf16.gmra.mxu0 %v576
        %v587 = vpop.f32.mrf.mxu0
        %v588 = vadd.f32 0.0, %v587
        %v589 = vpop.f32.mrf.mxu0
        %590 = vdwg.mxu0
        %591 = vmatpush.bf16.msra.mxu0 0
        %592 = vmatpush.bf16.msra.mxu0 0
        %593 = vmatpush.bf16.msra.mxu0 0
        %594 = vmatpush.bf16.msra.mxu0 0
        %595 = vmatpush.bf16.msra.mxu0 0
        %596 = vmatpush.bf16.msra.mxu0 0
        %597 = vmatpush.bf16.msra.mxu0 %v570
        %598 = vmatpush.bf16.msra.mxu0 %v568
        %599 = vmatmul.bf16.gmra.mxu0 %v576
        %v600 = vpop.f32.mrf.mxu0
        %v601 = vadd.f32 0.0, %v600
        %v602 = vpop.f32.mrf.mxu0
        %603 = vdwg.mxu0
        %v604 = vpack.c.bf16 %v480, %v480
        %v605 = vpack.c.bf16 %v534, %v534
        %v607 = vunpack.c.l.b16 %v604
        %v608 = vpack.c.b16 %v607, %v607
        %609 = vrot.lane.b32.xlu0 %v608, 96
        %v610 = vpop.permute.xlu0 %609
        %v612 = vsel %vm466, %v610, 0
        %v615 = vsel %vm466, %v605, 0
        %617 = vmatpush.bf16.xpose.msra.mxu0 0
        %618 = vmatpush.bf16.xpose.msra.mxu0 0
        %619 = vmatpush.bf16.xpose.msra.mxu0 0
        %620 = vmatpush.bf16.xpose.msra.mxu0 0
        %621 = vmatpush.bf16.xpose.msra.mxu0 0
        %622 = vmatpush.bf16.xpose.msra.mxu0 0
        %623 = vmatpush.bf16.xpose.msra.mxu0 0
        %624 = vmatpush.bf16.xpose.msra.mxu0 %v615
        %625 = vmatmul.bf16.gmra.mxu0 %v612
        %v626 = vpop.f32.mrf.mxu0
        %v627 = vadd.f32 0.0, %v626
        %v628 = vpop.f32.mrf.mxu0
        %629 = vdwg.mxu0
        %v630 = vmul.f32 %v627, 0.17677669
        %vm631 = vcmask 64512
        %v632 = vsel %vm631, %v630, -inf
        %633 = vmax.xlane.f32.xlu0 %v632
        %v634 = vpop.xlane.xlu0 %633
        %v635 = vsub.f32 %v630, %v634
        %v636 = vmul.f32 %v635, 1.442695
        %v637 = vpow.pop %v636
        %v638 = vsel %vm631, %v637, 0.0
        %639 = vadd.xlane.f32.xlu0 %v638
        %v640 = vpop.xlane.xlu0 %639
        %v641 = vrcp.pop %v640
        %v642 = vmul.f32 %v637, %v641
        %v643 = vpack.c.bf16 %v642, %v642
        %v645 = vunpack.c.l.b16 %v605
        %v646 = vpack.c.b16 %v645, %v645
        %647 = vrot.lane.b32.xlu0 %v646, 64
        %v648 = vpop.permute.xlu0 %647
        %v650 = vsel %vm631, %v643, 0
        %vm652 = vcmask 1043456
        %v654 = vsel %vm652, %v648, 0
        %656 = vmatpush.bf16.msra.mxu0 0
        %657 = vmatpush.bf16.msra.mxu0 0
        %658 = vmatpush.bf16.msra.mxu0 0
        %659 = vmatpush.bf16.msra.mxu0 0
        %660 = vmatpush.bf16.msra.mxu0 0
        %661 = vmatpush.bf16.msra.mxu0 0
        %662 = vmatpush.bf16.msra.mxu0 0
        %663 = vmatpush.bf16.msra.mxu0 %v654
        %664 = vmatmul.bf16.gmra.mxu0 %v650
        %v665 = vpop.f32.mrf.mxu0
        %v666 = vadd.f32 %v438, %v665
        %v667 = vpop.f32.mrf.mxu0
        %668 = vdwg.mxu0
        %669 = vrot.lane.b32.xlu0 %v646, 96
        %v670 = vpop.permute.xlu0 %669
        %v672 = vsel %vm466, %v670, 0
        %v675 = vsel %vm466, %v604, 0
        %677 = vmatpush.bf16.xpose.msra.mxu0 0
        %678 = vmatpush.bf16.xpose.msra.mxu0 0
        %679 = vmatpush.bf16.xpose.msra.mxu0 0
        %680 = vmatpush.bf16.xpose.msra.mxu0 0
        %681 = vmatpush.bf16.xpose.msra.mxu0 0
        %682 = vmatpush.bf16.xpose.msra.mxu0 0
        %683 = vmatpush.bf16.xpose.msra.mxu0 0
        %684 = vmatpush.bf16.xpose.msra.mxu0 %v675
        %685 = vmatmul.bf16.gmra.mxu0 %v672
        %v686 = vpop.f32.mrf.mxu0
        %v687 = vadd.f32 0.0, %v686
        %v688 = vpop.f32.mrf.mxu0
        %689 = vdwg.mxu0
        %v690 = vmul.f32 %v687, 0.17677669
        %v691 = vsel %vm631, %v690, -inf
        %692 = vmax.xlane.f32.xlu0 %v691
        %v693 = vpop.xlane.xlu0 %692
        %v694 = vsub.f32 %v690, %v693
        %v695 = vmul.f32 %v694, 1.442695
        %v696 = vpow.pop %v695
        %v697 = vsel %vm631, %v696, 0.0
        %698 = vadd.xlane.f32.xlu0 %v697
        %v699 = vpop.xlane.xlu0 %698
        %v700 = vrcp.pop %v699
        %v701 = vmul.f32 %v696, %v700
        %v702 = vpack.c.bf16 %v701, %v701
        %703 = vrot.lane.b32.xlu0 %v608, 64
        %v704 = vpop.permute.xlu0 %703
        %v706 = vsel %vm631, %v702, 0
        %v709 = vsel %vm652, %v704, 0
        %711 = vmatpush.bf16.msra.mxu0 0
        %712 = vmatpush.bf16.msra.mxu0 0
        %713 = vmatpush.bf16.msra.mxu0 0
        %714 = vmatpush.bf16.msra.mxu0 0
        %715 = vmatpush.bf16.msra.mxu0 0
        %716 = vmatpush.bf16.msra.mxu0 0
        %717 = vmatpush.bf16.msra.mxu0 0
        %718 = vmatpush.bf16.msra.mxu0 %v709
        %719 = vmatmul.bf16.gmra.mxu0 %v706
        %v720 = vpop.f32.mrf.mxu0
        %v721 = vadd.f32 %v439, %v720
        %v722 = vpop.f32.mrf.mxu0
        %723 = vdwg.mxu0
        %v724 = vpack.c.bf16 %v588, %v588
        %v726 = vunpack.c.l.b16 %v724
        %v727 = vpack.c.b16 %v726, %v726
        %728 = vrot.lane.b32.xlu0 %v727, 96
        %v729 = vpop.permute.xlu0 %728
        %730 = vrot.lane.b32.xlu0 %v646, 32
        %v731 = vpop.permute.xlu0 %730
        %v733 = vsel %vm466, %v729, 0
        %v736 = vsel %vm466, %v731, 0
        %738 = vmatpush.bf16.xpose.msra.mxu0 0
        %739 = vmatpush.bf16.xpose.msra.mxu0 0
        %740 = vmatpush.bf16.xpose.msra.mxu0 0
        %741 = vmatpush.bf16.xpose.msra.mxu0 0
        %742 = vmatpush.bf16.xpose.msra.mxu0 0
        %743 = vmatpush.bf16.xpose.msra.mxu0 0
        %744 = vmatpush.bf16.xpose.msra.mxu0 0
        %745 = vmatpush.bf16.xpose.msra.mxu0 %v736
        %746 = vmatmul.bf16.gmra.mxu0 %v733
        %v747 = vpop.f32.mrf.mxu0
        %v748 = vadd.f32 0.0, %v747
        %v749 = vpop.f32.mrf.mxu0
        %750 = vdwg.mxu0
        %v751 = vmul.f32 %v748, 0.17677669
        %v752 = vsel %vm631, %v751, -inf
        %753 = vmax.xlane.f32.xlu0 %v752
        %v754 = vpop.xlane.xlu0 %753
        %v755 = vsub.f32 %v751, %v754
        %v756 = vmul.f32 %v755, 1.442695
        %v757 = vpow.pop %v756
        %v758 = vsel %vm631, %v757, 0.0
        %759 = vadd.xlane.f32.xlu0 %v758
        %v760 = vpop.xlane.xlu0 %759
        %v761 = vrcp.pop %v760
        %v762 = vmul.f32 %v757, %v761
        %v763 = vpack.c.bf16 %v762, %v762
        %v764 = vpack.c.bf16 %v547, %v547
        %v766 = vunpack.c.l.b16 %v764
        %v767 = vpack.c.b16 %v766, %v766
        %768 = vrot.lane.b32.xlu0 %v767, 96
        %v769 = vpop.permute.xlu0 %768
        %v771 = vsel %vm631, %v763, 0
        %v774 = vsel %vm652, %v769, 0
        %776 = vmatpush.bf16.msra.mxu0 0
        %777 = vmatpush.bf16.msra.mxu0 0
        %778 = vmatpush.bf16.msra.mxu0 0
        %779 = vmatpush.bf16.msra.mxu0 0
        %780 = vmatpush.bf16.msra.mxu0 0
        %781 = vmatpush.bf16.msra.mxu0 0
        %782 = vmatpush.bf16.msra.mxu0 0
        %783 = vmatpush.bf16.msra.mxu0 %v774
        %784 = vmatmul.bf16.gmra.mxu0 %v771
        %v785 = vpop.f32.mrf.mxu0
        %v786 = vadd.f32 %v440, %v785
        %v787 = vpop.f32.mrf.mxu0
        %788 = vdwg.mxu0
        %v790 = vsel %vm466, %v764, 0
        %v793 = vsel %vm466, %v724, 0
        %795 = vmatpush.bf16.xpose.msra.mxu0 0
        %796 = vmatpush.bf16.xpose.msra.mxu0 0
        %797 = vmatpush.bf16.xpose.msra.mxu0 0
        %798 = vmatpush.bf16.xpose.msra.mxu0 0
        %799 = vmatpush.bf16.xpose.msra.mxu0 0
        %800 = vmatpush.bf16.xpose.msra.mxu0 0
        %801 = vmatpush.bf16.xpose.msra.mxu0 0
        %802 = vmatpush.bf16.xpose.msra.mxu0 %v793
        %803 = vmatmul.bf16.gmra.mxu0 %v790
        %v804 = vpop.f32.mrf.mxu0
        %v805 = vadd.f32 0.0, %v804
        %v806 = vpop.f32.mrf.mxu0
        %807 = vdwg.mxu0
        %v808 = vmul.f32 %v805, 0.17677669
        %v809 = vsel %vm631, %v808, -inf
        %810 = vmax.xlane.f32.xlu0 %v809
        %v811 = vpop.xlane.xlu0 %810
        %v812 = vsub.f32 %v808, %v811
        %v813 = vmul.f32 %v812, 1.442695
        %v814 = vpow.pop %v813
        %v815 = vsel %vm631, %v814, 0.0
        %816 = vadd.xlane.f32.xlu0 %v815
        %v817 = vpop.xlane.xlu0 %816
        %v818 = vrcp.pop %v817
        %v819 = vmul.f32 %v814, %v818
        %v820 = vpack.c.bf16 %v819, %v819
        %821 = vrot.lane.b32.xlu0 %v727, 64
        %v822 = vpop.permute.xlu0 %821
        %v824 = vsel %vm631, %v820, 0
        %v827 = vsel %vm652, %v822, 0
        %829 = vmatpush.bf16.msra.mxu0 0
        %830 = vmatpush.bf16.msra.mxu0 0
        %831 = vmatpush.bf16.msra.mxu0 0
        %832 = vmatpush.bf16.msra.mxu0 0
        %833 = vmatpush.bf16.msra.mxu0 0
        %834 = vmatpush.bf16.msra.mxu0 0
        %835 = vmatpush.bf16.msra.mxu0 0
        %836 = vmatpush.bf16.msra.mxu0 %v827
        %837 = vmatmul.bf16.gmra.mxu0 %v824
        %v838 = vpop.f32.mrf.mxu0
        %v839 = vadd.f32 %v439, %v838
        %v840 = vpop.f32.mrf.mxu0
        %841 = vdwg.mxu0
        %v842 = vpack.c.bf16 %v493, %v493
        %843 = vrot.lane.b32.xlu0 %v727, 32
        %v844 = vpop.permute.xlu0 %843
        %v846 = vsel %vm466, %v842, 0
        %v849 = vsel %vm466, %v844, 0
        %851 = vmatpush.bf16.xpose.msra.mxu0 0
        %852 = vmatpush.bf16.xpose.msra.mxu0 0
        %853 = vmatpush.bf16.xpose.msra.mxu0 0
        %854 = vmatpush.bf16.xpose.msra.mxu0 0
        %855 = vmatpush.bf16.xpose.msra.mxu0 0
        %856 = vmatpush.bf16.xpose.msra.mxu0 0
        %857 = vmatpush.bf16.xpose.msra.mxu0 0
        %858 = vmatpush.bf16.xpose.msra.mxu0 %v849
        %859 = vmatmul.bf16.gmra.mxu0 %v846
        %v860 = vpop.f32.mrf.mxu0
        %v861 = vadd.f32 0.0, %v860
        %v862 = vpop.f32.mrf.mxu0
        %863 = vdwg.mxu0
        %v864 = vmul.f32 %v861, 0.17677669
        %v865 = vsel %vm631, %v864, -inf
        %866 = vmax.xlane.f32.xlu0 %v865
        %v867 = vpop.xlane.xlu0 %866
        %v868 = vsub.f32 %v864, %v867
        %v869 = vmul.f32 %v868, 1.442695
        %v870 = vpow.pop %v869
        %v871 = vsel %vm631, %v870, 0.0
        %872 = vadd.xlane.f32.xlu0 %v871
        %v873 = vpop.xlane.xlu0 %872
        %v874 = vrcp.pop %v873
        %v875 = vmul.f32 %v870, %v874
        %v876 = vpack.c.bf16 %v875, %v875
        %v877 = vpack.c.bf16 %v601, %v601
        %v879 = vunpack.c.l.b16 %v877
        %v880 = vpack.c.b16 %v879, %v879
        %881 = vrot.lane.b32.xlu0 %v880, 96
        %v882 = vpop.permute.xlu0 %881
        %v884 = vsel %vm631, %v876, 0
        %v887 = vsel %vm652, %v882, 0
        %889 = vmatpush.bf16.msra.mxu0 0
        %890 = vmatpush.bf16.msra.mxu0 0
        %891 = vmatpush.bf16.msra.mxu0 0
        %892 = vmatpush.bf16.msra.mxu0 0
        %893 = vmatpush.bf16.msra.mxu0 0
        %894 = vmatpush.bf16.msra.mxu0 0
        %895 = vmatpush.bf16.msra.mxu0 0
        %896 = vmatpush.bf16.msra.mxu0 %v887
        %897 = vmatmul.bf16.gmra.mxu0 %v884
        %v898 = vpop.f32.mrf.mxu0
        %v899 = vadd.f32 %v438, %v898
        %v900 = vpop.f32.mrf.mxu0
        %901 = vdwg.mxu0
        %902 = vrot.lane.b32.xlu0 %v608, 32
        %v903 = vpop.permute.xlu0 %902
        %v905 = vsel %vm466, %v877, 0
        %v908 = vsel %vm466, %v903, 0
        %910 = vmatpush.bf16.xpose.msra.mxu0 0
        %911 = vmatpush.bf16.xpose.msra.mxu0 0
        %912 = vmatpush.bf16.xpose.msra.mxu0 0
        %913 = vmatpush.bf16.xpose.msra.mxu0 0
        %914 = vmatpush.bf16.xpose.msra.mxu0 0
        %915 = vmatpush.bf16.xpose.msra.mxu0 0
        %916 = vmatpush.bf16.xpose.msra.mxu0 0
        %917 = vmatpush.bf16.xpose.msra.mxu0 %v908
        %918 = vmatmul.bf16.gmra.mxu0 %v905
        %v919 = vpop.f32.mrf.mxu0
        %v920 = vadd.f32 0.0, %v919
        %v921 = vpop.f32.mrf.mxu0
        %922 = vdwg.mxu0
        %v923 = vmul.f32 %v920, 0.17677669
        %v924 = vsel %vm631, %v923, -inf
        %925 = vmax.xlane.f32.xlu0 %v924
        %v926 = vpop.xlane.xlu0 %925
        %v927 = vsub.f32 %v923, %v926
        %v928 = vmul.f32 %v927, 1.442695
        %v929 = vpow.pop %v928
        %v930 = vsel %vm631, %v929, 0.0
        %931 = vadd.xlane.f32.xlu0 %v930
        %v932 = vpop.xlane.xlu0 %931
        %v933 = vrcp.pop %v932
        %v934 = vmul.f32 %v929, %v933
        %v935 = vpack.c.bf16 %v934, %v934
        %v937 = vunpack.c.l.b16 %v842
        %v938 = vpack.c.b16 %v937, %v937
        %939 = vrot.lane.b32.xlu0 %v938, 96
        %v940 = vpop.permute.xlu0 %939
        %v942 = vsel %vm631, %v935, 0
        %v945 = vsel %vm652, %v940, 0
        %947 = vmatpush.bf16.msra.mxu0 0
        %948 = vmatpush.bf16.msra.mxu0 0
        %949 = vmatpush.bf16.msra.mxu0 0
        %950 = vmatpush.bf16.msra.mxu0 0
        %951 = vmatpush.bf16.msra.mxu0 0
        %952 = vmatpush.bf16.msra.mxu0 0
        %953 = vmatpush.bf16.msra.mxu0 0
        %954 = vmatpush.bf16.msra.mxu0 %v945
        %955 = vmatmul.bf16.gmra.mxu0 %v942
        %v956 = vpop.f32.mrf.mxu0
        %v957 = vadd.f32 %v440, %v956
        %v958 = vpop.f32.mrf.mxu0
        %959 = vdwg.mxu0
        %v960 = vadd.f32 %v786, %v839
        %v961 = vadd.f32 %v957, %v899
        %v962 = vadd.f32 %v666, %v721
        %v963 = vpack.c.bf16 %v960, %v960
        %v964 = vld [vmem:[#allocation13] sm:$0xf]
        %v965 = vld [vmem:[#allocation13 + $0x4] sm:$0xf]
        %v966 = vld [vmem:[#allocation13 + $0x8] sm:$0xf]
        %v967 = vld [vmem:[#allocation13 + $0xc] sm:$0xf]
        %v972 = vunpack.c.l.b16 %v964
        %v973 = vunpack.c.l.b16 %v965
        %v974 = vunpack.c.l.b16 %v966
        %v975 = vunpack.c.l.b16 %v967
        %v976 = vpack.c.b16 %v973, %v972
        %v977 = vpack.c.b16 %v975, %v974
        %v981 = vsel %vm466, %v963, 0
        %983 = vmatpush.bf16.msra.mxu0 0
        %984 = vmatpush.bf16.msra.mxu0 0
        %985 = vmatpush.bf16.msra.mxu0 0
        %986 = vmatpush.bf16.msra.mxu0 0
        %987 = vmatpush.bf16.msra.mxu0 0
        %988 = vmatpush.bf16.msra.mxu0 0
        %989 = vmatpush.bf16.msra.mxu0 %v977
        %990 = vmatpush.bf16.msra.mxu0 %v976
        %991 = vmatmul.bf16.gmra.mxu0 %v981
        %v992 = vpop.f32.mrf.mxu0
        %v993 = vadd.f32 0.0, %v992
        %v994 = vpop.f32.mrf.mxu0
        %995 = vdwg.mxu0
        %v996 = vpack.c.bf16 %v993, %v993
        %997 = vrot.lane.b32.xlu0 %v938, 64
        %v998 = vpop.permute.xlu0 %997
        %v1000 = vsel %vm466, %v996, 0
        %v1003 = vsel %vm466, %v998, 0
        %1005 = vmatpush.bf16.xpose.msra.mxu0 0
        %1006 = vmatpush.bf16.xpose.msra.mxu0 0
        %1007 = vmatpush.bf16.xpose.msra.mxu0 0
        %1008 = vmatpush.bf16.xpose.msra.mxu0 0
        %1009 = vmatpush.bf16.xpose.msra.mxu0 0
        %1010 = vmatpush.bf16.xpose.msra.mxu0 0
        %1011 = vmatpush.bf16.xpose.msra.mxu0 0
        %1012 = vmatpush.bf16.xpose.msra.mxu0 %v1003
        %1013 = vmatmul.bf16.gmra.mxu0 %v1000
        %v1014 = vpop.f32.mrf.mxu0
        %v1015 = vadd.f32 0.0, %v1014
        %v1016 = vpop.f32.mrf.mxu0
        %1017 = vdwg.mxu0
        %v1018 = vmul.f32 %v1015, 0.17677669
        %v1019 = vsel %vm631, %v1018, -inf
        %1020 = vmax.xlane.f32.xlu0 %v1019
        %v1021 = vpop.xlane.xlu0 %1020
        %v1022 = vsub.f32 %v1018, %v1021
        %v1023 = vmul.f32 %v1022, 1.442695
        %v1024 = vpow.pop %v1023
        %v1025 = vsel %vm631, %v1024, 0.0
        %1026 = vadd.xlane.f32.xlu0 %v1025
        %v1027 = vpop.xlane.xlu0 %1026
        %v1028 = vrcp.pop %v1027
        %v1029 = vmul.f32 %v1024, %v1028
        %v1030 = vpack.c.bf16 %v1029, %v1029
        %1031 = vrot.lane.b32.xlu0 %v938, 32
        %v1032 = vpop.permute.xlu0 %1031
        %v1034 = vsel %vm631, %v1030, 0
        %v1037 = vsel %vm652, %v1032, 0
        %1039 = vmatpush.bf16.msra.mxu0 0
        %1040 = vmatpush.bf16.msra.mxu0 0
        %1041 = vmatpush.bf16.msra.mxu0 0
        %1042 = vmatpush.bf16.msra.mxu0 0
        %1043 = vmatpush.bf16.msra.mxu0 0
        %1044 = vmatpush.bf16.msra.mxu0 0
        %1045 = vmatpush.bf16.msra.mxu0 0
        %1046 = vmatpush.bf16.msra.mxu0 %v1037
        %1047 = vmatmul.bf16.gmra.mxu0 %v1034
        %v1048 = vpop.f32.mrf.mxu0
        %v1049 = vadd.f32 0.0, %v1048
        %v1050 = vpop.f32.mrf.mxu0
        %1051 = vdwg.mxu0
        %1053 = vrot.lane.b32.xlu0 %v439, 32
        %v1054 = vpop.permute.xlu0 %1053
        %1057 = vrot.lane.b32.xlu0 %v440, 64
        %v1058 = vpop.permute.xlu0 %1057
        %1061 = vrot.lane.b32.xlu0 %v962, 96
        %v1062 = vpop.permute.xlu0 %1061
        %1065 = vrot.lane.b32.xlu0 %v960, 32
        %v1066 = vpop.permute.xlu0 %1065
        %1069 = vrot.lane.b32.xlu0 %v1049, 64
        %v1070 = vpop.permute.xlu0 %1069
        %v1072 = vsel %vm466, %v438, %v1054
        %vm1073 = vcmask 523264
        %v1074 = vsel %vm1073, %v1072, %v1058
        %vm1075 = vcmask 785408
        %v1076 = vsel %vm1075, %v1074, %v1062
        %v1077 = vsel %vm466, %v961, %v1066
        %v1078 = vsel %vm1073, %v1077, %v1070
        %1079 = vst [vmem:[%s436] sm:$0xff] %v1076
        %1080 = vst.msk [vmem:[%s436 + $0x8] sm:$0xff] %vm1075, %v1078
        %s1081 = sand.u32 %s199, 1
        %s1082 = scalar_lea.sflag [#allocation4], %s1081
        %s1083 = sand.u32 %s199, 1
        %s1084 = smul.addr %s1083, 16
        %s1085 = scalar_lea.vmem [#allocation14], %s1084
        // Predicated region
        $region77: #{tpu_custom_call.1} parent=47 // pred_check
          %p1086 = pneg %p209
        $region78: #{tpu_custom_call.1} parent=47 // pred_check_branch
          %1088 = sbr.rel (%p1086) target = $region80
        $region79: #{tpu_custom_call.1} parent=47 // pred_region
          %1090 = vsyncadd %s1082, 0
          %s1091 = smul.addr %s29, 2
          %s1092 = smul.addr %s1091, 8
          %s1093 = scalar_lea.hbm %s7, %s1092
          %s1095 = sshll.u32 %s1085, 4
          %s1096 = int_to_ptr.vmem [resolvable:$true] %s1095
          %s1097 = sshll.u32 %s1093, 4
          %s1098 = int_to_ptr.hbm [resolvable:$true] %s1097
          %1100 = dma.vmem_to_hbm [thread:$0]  %s1096, 256, %s1098, %s1082
        $region80: #{tpu_custom_call.1} parent=47 // pred_fallthru
          _
      $region48: #{tpu_custom_call.1} parent=5 // pred_fallthru
        _
      %p1101 = scmp.le.s32.totalorder 2, %s24
      // Predicated region
      $region81: #{tpu_custom_call.1} parent=5 // pred_check
        %p1102 = pneg %p1101
      $region82: #{tpu_custom_call.1} parent=5 // pred_check_branch
        %1104 = sbr.rel (%p1102) target = $region84
      $region83: #{tpu_custom_call.1} parent=5 // pred_region
        %s1105 = ssub.s32 %s24, 2
        // Predicated region
        $region85: #{tpu_custom_call.1} parent=83 // pred_check
          %p1106 = pneg %p215
        $region86: #{tpu_custom_call.1} parent=83 // pred_check_branch
          %1108 = sbr.rel (%p1106) target = $region88
        $region87: #{tpu_custom_call.1} parent=83 // pred_region
          %s1109 = sand.u32 %s200, 1
          %s1110 = scalar_lea.sflag [#allocation4], %s1109
          %s1111 = sand.u32 %s200, 1
          %s1112 = smul.addr %s1111, 16
          %s1113 = scalar_lea.vmem [#allocation14], %s1112
          %1115 = dma.done %s1110, 256
        $region88: #{tpu_custom_call.1} parent=83 // pred_fallthru
          _
      $region84: #{tpu_custom_call.1} parent=5 // pred_fallthru
        _
    $region6: #{tpu_custom_call.1} parent=1 // loop_footer
      %s28 = sadd.s32 1, %s24
    $region7: #{tpu_custom_call.1} parent=1 // loop_footer_branch
      %23 = sbr.rel target = $region3
    $region8: #{tpu_custom_call.1} parent=1 // loop_exit
      _
    %1116 = vsyncpa [#allocation3], 1
    %s1117 = scalar_lea.sflag [#allocation3], 1
    %1118 = vsyncpa %s1117, 1
    %1119 = vsyncpa [#allocation6], 1
    %s1120 = scalar_lea.sflag [#allocation6], 1
    %1121 = vsyncpa %s1120, 1
    %1122 = vsyncpa [#allocation9], 1
    %1123 = vsyncpa [#allocation12], 1
    %1124 = vsyncpa [#allocation4], 1
    %s1125 = scalar_lea.sflag [#allocation4], 1
    %1126 = vsyncpa %s1125, 1

</llo_original>
